<compile_context>
chip_gen: v7x
topology: tpu7x:2x2x1
jax: 0.10.0
libtpu: 0.0.40
codegen_flags: <defaults>
</compile_context>

<pallas_src>
import functools

import jax
import jax.numpy as jnp
from jax.experimental import pallas as pl
from jax.experimental.pallas import tpu as pltpu


def mlp_kernel(x_ref, w1_ref, b1_ref, w2_ref, b2_ref, o_ref):
    # Linear 1: (TILE_B, IN)bf16 @ (IN, H)bf16 -> f32 accum; bias + ReLU on VPU in f32.
    h = jnp.dot(x_ref[...], w1_ref[...], preferred_element_type=jnp.float32)
    h = jnp.maximum(h + b1_ref[...], 0.0)
    # Linear 2: cast activations back to bf16 for the MXU, accumulate in f32.
    y = jnp.dot(h.astype(jnp.bfloat16), w2_ref[...],
                preferred_element_type=jnp.float32)
    y = y + b2_ref[...]
    # bf16 output stream (halves writeback bytes vs f32).
    o_ref[...] = y.astype(o_ref.dtype)


def _round_up(n, m):
    return ((n + m - 1) // m) * m


def _pad_to(a, shape):
    widths = [(0, t - s) for s, t in zip(a.shape, shape)]
    if all(w == (0, 0) for w in widths):
        return a
    return jnp.pad(a, widths)


@functools.partial(jax.jit, static_argnames=("tile_b",))
def my_sequential_forward(x, w1, b1, w2, b2, *, tile_b=512):
    """relu(x @ w1 + b1) @ w2 + b2 as one batch-tiled Pallas kernel.

    x:  (B, IN)    w1: (IN, H)   b1: (1, H)   w2: (H, OUT)   b2: (1, OUT)
    (w1/w2 are the PyTorch nn.Linear weights pre-transposed.)
    Returns (B, OUT) bfloat16.
    """
    B, IN = x.shape
    H = w1.shape[1]
    OUT = w2.shape[1]

    # Lane-dense feature dims (multiples of 128).
    INp = _round_up(IN, 128)
    Hp = _round_up(H, 128)
    OUTp = _round_up(OUT, 128)

    # Batch tile: as big as requested but never larger than the padded batch;
    # multiples of 256 keep the 256x256 MXU (v6e/v7x) fully fed, and fewer
    # grid steps amortize the ~0.35us per-step overhead.
    tile_b = max(128, min(tile_b, _round_up(B, 256)))
    Bp = _round_up(B, tile_b)

    # Cast BEFORE padding so padding happens on the narrow bf16 copy; under
    # jit the pad+cast fuse with the kernel's operand preparation.
    xp = _pad_to(x.astype(jnp.bfloat16), (Bp, INp))
    w1p = _pad_to(w1.astype(jnp.bfloat16), (INp, Hp))
    w2p = _pad_to(w2.astype(jnp.bfloat16), (Hp, OUTp))
    b1p = _pad_to(b1.reshape(1, -1).astype(jnp.float32), (1, Hp))
    b2p = _pad_to(b2.reshape(1, -1).astype(jnp.float32), (1, OUTp))

    grid = (Bp // tile_b,)

    # Constant-index operands stay VMEM-resident; single-buffer them so the
    # default double-buffering doesn't waste VMEM (reserved for x/out tiles).
    resident = dict(pipeline_mode=pl.Buffered(1))

    flops = 2 * Bp * (INp * Hp + Hp * OUTp)
    bytes_accessed = (Bp * INp * 2          # x in (bf16)
                      + INp * Hp * 2        # w1 (bf16)
                      + Hp * OUTp * 2       # w2 (bf16)
                      + Hp * 4 + OUTp * 4   # biases (f32)
                      + Bp * OUTp * 2)      # y out (bf16)

    out = pl.pallas_call(
        mlp_kernel,
        out_shape=jax.ShapeDtypeStruct((Bp, OUTp), jnp.bfloat16),
        grid=grid,
        in_specs=[
            pl.BlockSpec((tile_b, INp), lambda i: (i, 0)),           # x: streamed batch tile
            pl.BlockSpec((INp, Hp), lambda i: (0, 0), **resident),   # w1: resident
            pl.BlockSpec((1, Hp), lambda i: (0, 0), **resident),     # b1: resident row
            pl.BlockSpec((Hp, OUTp), lambda i: (0, 0), **resident),  # w2: resident
            pl.BlockSpec((1, OUTp), lambda i: (0, 0), **resident),   # b2: resident row
        ],
        out_specs=pl.BlockSpec((tile_b, OUTp), lambda i: (i, 0)),
        compiler_params=pltpu.CompilerParams(
            dimension_semantics=("parallel",),       # megacore sharding on v7x
            vmem_limit_bytes=48 * 1024 * 1024,       # above 16/32 MiB scoped defaults
        ),
        cost_estimate=pl.CostEstimate(
            flops=flops, transcendentals=0, bytes_accessed=bytes_accessed),
    )(xp, w1p, b1p, w2p, b2p)

    return out[:B, :OUT]


def reference_forward(x, w1, b1, w2, b2):
    # Match the kernel's numerics: bf16 operands, f32 accumulation, bf16 output.
    xb = x.astype(jnp.bfloat16).astype(jnp.float32)
    w1b = w1.astype(jnp.bfloat16).astype(jnp.float32)
    w2b = w2.astype(jnp.bfloat16).astype(jnp.float32)
    h = jnp.maximum(xb @ w1b + b1, 0.0)
    hb = h.astype(jnp.bfloat16).astype(jnp.float32)
    y = hb @ w2b + b2
    return y.astype(jnp.bfloat16)


if __name__ == "__main__":
    key = jax.random.PRNGKey(0)
    k_x, k_w1, k_b1, k_w2, k_b2 = jax.random.split(key, 5)

    # 128/256-aligned sizes; B=1024 with tile_b=512 -> grid of 2 (even, >=2)
    # so both v7x TensorCores get a tile while shapes stay small.
    B, IN, H, OUT = 1024, 128, 256, 128

    x = jax.random.normal(k_x, (B, IN), dtype=jnp.float32)
    w1 = jax.random.uniform(k_w1, (IN, H), jnp.float32, -1.0, 1.0) / jnp.sqrt(IN)
    b1 = jax.random.uniform(k_b1, (1, H), jnp.float32, -1.0, 1.0) / jnp.sqrt(IN)
    w2 = jax.random.uniform(k_w2, (H, OUT), jnp.float32, -1.0, 1.0) / jnp.sqrt(H)
    b2 = jax.random.uniform(k_b2, (1, OUT), jnp.float32, -1.0, 1.0) / jnp.sqrt(H)

    out = my_sequential_forward(x, w1, b1, w2, b2)
    out = jax.block_until_ready(out)

    ref = reference_forward(x, w1, b1, w2, b2)
    assert out.shape == (B, OUT), out.shape
    assert out.dtype == jnp.bfloat16, out.dtype
    # bf16 output + summation-order differences -> keep tolerance loose.
    assert jnp.allclose(out.astype(jnp.float32), ref.astype(jnp.float32),
                        atol=3e-2, rtol=3e-2), "mismatch vs reference"

    print("KERNEL_OK")
</pallas_src>

<mosaic_0001>
module attributes {stable_mosaic.version = 11 : i64} {
  func.func @mlp_kernel(%arg0: i32, %arg1: memref<512x128xbf16, #tpu.memory_space<vmem>>, %arg2: memref<128x256xbf16, #tpu.memory_space<vmem>>, %arg3: memref<1x256xf32, #tpu.memory_space<vmem>>, %arg4: memref<256x128xbf16, #tpu.memory_space<vmem>>, %arg5: memref<1x128xf32, #tpu.memory_space<vmem>>, %arg6: memref<512x128xbf16, #tpu.memory_space<vmem>>) attributes {dimension_semantics = [#tpu.dimension_semantics<parallel>], iteration_bounds = array<i64: 2>, scalar_prefetch = 0 : i64, scratch_operands = 0 : i64, tpu.core_type = #tpu.core_type<tc>, window_params = [{transform_indices = @transform_0, window_bounds = array<i64: 512, 128>}, {pipeline_mode = #tpu.pipeline_mode<synchronous>, transform_indices = @transform_1, window_bounds = array<i64: 128, 256>}, {pipeline_mode = #tpu.pipeline_mode<synchronous>, transform_indices = @transform_2, window_bounds = array<i64: 1, 256>}, {pipeline_mode = #tpu.pipeline_mode<synchronous>, transform_indices = @transform_3, window_bounds = array<i64: 256, 128>}, {pipeline_mode = #tpu.pipeline_mode<synchronous>, transform_indices = @transform_4, window_bounds = array<i64: 1, 128>}, {transform_indices = @transform_5, window_bounds = array<i64: 512, 128>}]} {
    %c0 = arith.constant 0 : index
    %c0_0 = arith.constant 0 : index
    %0 = vector.load %arg1[%c0, %c0_0] : memref<512x128xbf16, #tpu.memory_space<vmem>>, vector<512x128xbf16>
    %c0_1 = arith.constant 0 : index
    %c0_2 = arith.constant 0 : index
    %1 = vector.load %arg2[%c0_1, %c0_2] : memref<128x256xbf16, #tpu.memory_space<vmem>>, vector<128x256xbf16>
    %cst = arith.constant dense<0.000000e+00> : vector<512x256xf32>
    %2 = tpu.matmul %0, %1, %cst {dimension_numbers = #tpu.dot_dimension_numbers<[1], [0], [0], [1], [0, 0, 1, 1], [], []>} : vector<512x128xbf16>, vector<128x256xbf16>, vector<512x256xf32> -> vector<512x256xf32>
    %c0_3 = arith.constant 0 : index
    %c0_4 = arith.constant 0 : index
    %3 = vector.load %arg3[%c0_3, %c0_4] : memref<1x256xf32, #tpu.memory_space<vmem>>, vector<1x256xf32>
    %4 = vector.broadcast %3 : vector<1x256xf32> to vector<512x256xf32>
    %5 = arith.addf %2, %4 : vector<512x256xf32>
    %cst_5 = arith.constant 0.000000e+00 : f32
    %6 = vector.broadcast %cst_5 : f32 to vector<512x256xf32>
    %7 = arith.maximumf %5, %6 : vector<512x256xf32>
    %8 = arith.truncf %7 : vector<512x256xf32> to vector<512x256xbf16>
    %c0_6 = arith.constant 0 : index
    %c0_7 = arith.constant 0 : index
    %9 = vector.load %arg4[%c0_6, %c0_7] : memref<256x128xbf16, #tpu.memory_space<vmem>>, vector<256x128xbf16>
    %cst_8 = arith.constant dense<0.000000e+00> : vector<512x128xf32>
    %10 = tpu.matmul %8, %9, %cst_8 {dimension_numbers = #tpu.dot_dimension_numbers<[1], [0], [0], [1], [0, 0, 1, 1], [], []>} : vector<512x256xbf16>, vector<256x128xbf16>, vector<512x128xf32> -> vector<512x128xf32>
    %c0_9 = arith.constant 0 : index
    %c0_10 = arith.constant 0 : index
    %11 = vector.load %arg5[%c0_9, %c0_10] : memref<1x128xf32, #tpu.memory_space<vmem>>, vector<1x128xf32>
    %12 = vector.broadcast %11 : vector<1x128xf32> to vector<512x128xf32>
    %13 = arith.addf %10, %12 : vector<512x128xf32>
    %14 = arith.truncf %13 : vector<512x128xf32> to vector<512x128xbf16>
    %c0_11 = arith.constant 0 : index
    %c0_12 = arith.constant 0 : index
    %15 = vector.load %arg6[%c0_11, %c0_12] : memref<512x128xbf16, #tpu.memory_space<vmem>>, vector<512x128xbf16>
    tpu.vector_store %arg6[%c0_11, %c0_12], %14 {strides = array<i32>} : memref<512x128xbf16, #tpu.memory_space<vmem>>, vector<512x128xbf16>,
    return
  }
  func.func @transform_0(%arg0: i32) -> (i32, i32) {
    %c0_i32 = arith.constant 0 : i32
    %c0_i32_0 = arith.constant 0 : i32
    return %arg0, %c0_i32 : i32, i32
  }
  func.func @transform_1(%arg0: i32) -> (i32, i32) {
    %c0_i32 = arith.constant 0 : i32
    %c0_i32_0 = arith.constant 0 : i32
    %c0_i32_1 = arith.constant 0 : i32
    return %c0_i32, %c0_i32_0 : i32, i32
  }
  func.func @transform_2(%arg0: i32) -> (i32, i32) {
    %c0_i32 = arith.constant 0 : i32
    %c0_i32_0 = arith.constant 0 : i32
    %c0_i32_1 = arith.constant 0 : i32
    return %c0_i32, %c0_i32_0 : i32, i32
  }
  func.func @transform_3(%arg0: i32) -> (i32, i32) {
    %c0_i32 = arith.constant 0 : i32
    %c0_i32_0 = arith.constant 0 : i32
    %c0_i32_1 = arith.constant 0 : i32
    return %c0_i32, %c0_i32_0 : i32, i32
  }
  func.func @transform_4(%arg0: i32) -> (i32, i32) {
    %c0_i32 = arith.constant 0 : i32
    %c0_i32_0 = arith.constant 0 : i32
    %c0_i32_1 = arith.constant 0 : i32
    return %c0_i32, %c0_i32_0 : i32, i32
  }
  func.func @transform_5(%arg0: i32) -> (i32, i32) {
    %c0_i32 = arith.constant 0 : i32
    %c0_i32_0 = arith.constant 0 : i32
    return %arg0, %c0_i32 : i32, i32
  }
}

</mosaic_0001>

<llo_original>
// kernel: my_sequential_forward.1
$region0: #{my_sequential_forward.1}
  #allocation0 [shape = 'u32[]', space=smem, size = 0x4, offset = 0x4, fixed_abs, tag = 'smem constant byte address 0x4 - core index']
  #allocation1 [shape = 'u32[144,128]{1,0:T(1,128)}', space=vmem, size = 0x12000, scoped, tag = 'internal scratch']
  %s0 = inlined_call_operand.vmem [shape: bf16[1024,128], index: 0, kind: input, shape index: {}]
  %s1 = inlined_call_operand.vmem [shape: bf16[128,256], index: 1, kind: input, shape index: {}]
  %s2 = inlined_call_operand.vmem [shape: f32[1,256], index: 2, kind: input, shape index: {}]
  %s3 = inlined_call_operand.vmem [shape: bf16[256,128], index: 3, kind: input, shape index: {}]
  %s4 = inlined_call_operand.vmem [shape: f32[1,128], index: 4, kind: input, shape index: {}]
  %s5 = inlined_call_operand.hbm [shape: bf16[1024,128], index: 5, kind: output, shape index: {}]
  %s6 = sld [smem:[#allocation0]]
  $region53: #{my_sequential_forward.1} parent=0
    _
  %s8 = ssub.s32 1, %s6
  %s9 = scalar_select 0, %s8, %s6
  $region1: #{my_sequential_forward.1} parent=0
    #allocation2 [shape = 'u8[262144]{0}', space=vmem, size = 0x40000, scoped, tag = 'output window, operand 0']
    #allocation3 [shape = 's32[2]{0}', space=sflag, size = 0x8, scoped, tag = 'scoped memory for my_sequential_forward.1']
    %10 = vsyncpa [#allocation3], 0
    %s11 = scalar_lea.sflag [#allocation3], 1
    %12 = vsyncpa %s11, 0
    loop: start=0, step=1, limit=4
    $region2: #{my_sequential_forward.1} parent=1 // loop_pre_header
      _
    $region3: #{my_sequential_forward.1} parent=1 // loop_header
      %s14 = sphi 0, %s18
      %p15 = scmp.ge.s32.totalorder %s14, 4
      %s24 = sphi 0, %s26
      %s27 = sphi 0, %s24
      %s28 = sphi 0, %s27
      %s44 = sphi 0, %s28
      %s48 = sphi 0, %s48
      %s50 = sphi 0, %s48
      %s51 = sphi 0, %s50
      %s65 = sphi 0, %s51
      %s69 = sphi 0, %s69
      %s71 = sphi 0, %s69
      %s72 = sphi 0, %s71
      %s86 = sphi 0, %s72
      %s90 = sphi 0, %s90
      %s92 = sphi 0, %s90
      %s93 = sphi 0, %s92
      %s107 = sphi 0, %s93
      %s111 = sphi 0, %s111
      %s113 = sphi 0, %s111
      %s114 = sphi 0, %s113
      %s128 = sphi 0, %s114
      %s134 = sphi 0, %s136
      %s137 = sphi 0, %s134
      %s138 = sphi 0, %s137
      %s154 = sphi 0, %s138
    $region4: #{my_sequential_forward.1} parent=1 // loop_header_branch
      %17 = sbr.rel (%p15) target = $region8
    $region5: #{my_sequential_forward.1} parent=1 // loop_body
      %s19 = ssub.s32 %s14, 1
      %s20 = ssub.s32 %s14, 2
      %s21 = sadd.s32 %s14, 1
      %s22 = ssub.s32 %s14, %s21
      %p23 = scmp.eq.s32.totalorder %s22, 0
      %s25 = sadd.s32 %s24, 1
      %s26 = scalar_select %p23, %s24, %s25
      %p29 = pneg %p23
      %p30 = scmp.eq.s32.totalorder %s14, 1
      %p31 = por %p29, %p30
      %p32 = scmp.ne.s32.totalorder %s24, %s27
      %p33 = scmp.eq.s32.totalorder %s14, 0
      %p34 = por %p32, %p33
      %p35 = scmp.ne.s32.totalorder %s24, %s27
      %p36 = scmp.eq.s32.totalorder %s19, 1
      %p37 = por %p35, %p36
      %p38 = scmp.ne.s32.totalorder %s27, %s28
      %p39 = scmp.eq.s32.totalorder %s19, 0
      %p40 = por %p38, %p39
      %p41 = scmp.ne.s32.totalorder %s27, %s28
      %p42 = scmp.eq.s32.totalorder %s20, 1
      %p43 = por %p41, %p42
      %p45 = scmp.ne.s32.totalorder %s28, %s44
      %p46 = scmp.eq.s32.totalorder %s20, 0
      %p47 = por %p45, %p46
      %s49 = sadd.s32 %s48, 1
      %p52 = scmp.eq.s32.totalorder %s14, 1
      %p53 = scmp.ne.s32.totalorder %s48, %s50
      %p54 = scmp.eq.s32.totalorder %s14, 0
      %p55 = por %p53, %p54
      %p56 = scmp.ne.s32.totalorder %s48, %s50
      %p57 = scmp.eq.s32.totalorder %s19, 1
      %p58 = por %p56, %p57
      %p59 = scmp.ne.s32.totalorder %s50, %s51
      %p60 = scmp.eq.s32.totalorder %s19, 0
      %p61 = por %p59, %p60
      %p62 = scmp.ne.s32.totalorder %s50, %s51
      %p63 = scmp.eq.s32.totalorder %s20, 1
      %p64 = por %p62, %p63
      %p66 = scmp.ne.s32.totalorder %s51, %s65
      %p67 = scmp.eq.s32.totalorder %s20, 0
      %p68 = por %p66, %p67
      %s70 = sadd.s32 %s69, 1
      %p73 = scmp.eq.s32.totalorder %s14, 1
      %p74 = scmp.ne.s32.totalorder %s69, %s71
      %p75 = scmp.eq.s32.totalorder %s14, 0
      %p76 = por %p74, %p75
      %p77 = scmp.ne.s32.totalorder %s69, %s71
      %p78 = scmp.eq.s32.totalorder %s19, 1
      %p79 = por %p77, %p78
      %p80 = scmp.ne.s32.totalorder %s71, %s72
      %p81 = scmp.eq.s32.totalorder %s19, 0
      %p82 = por %p80, %p81
      %p83 = scmp.ne.s32.totalorder %s71, %s72
      %p84 = scmp.eq.s32.totalorder %s20, 1
      %p85 = por %p83, %p84
      %p87 = scmp.ne.s32.totalorder %s72, %s86
      %p88 = scmp.eq.s32.totalorder %s20, 0
      %p89 = por %p87, %p88
      %s91 = sadd.s32 %s90, 1
      %p94 = scmp.eq.s32.totalorder %s14, 1
      %p95 = scmp.ne.s32.totalorder %s90, %s92
      %p96 = scmp.eq.s32.totalorder %s14, 0
      %p97 = por %p95, %p96
      %p98 = scmp.ne.s32.totalorder %s90, %s92
      %p99 = scmp.eq.s32.totalorder %s19, 1
      %p100 = por %p98, %p99
      %p101 = scmp.ne.s32.totalorder %s92, %s93
      %p102 = scmp.eq.s32.totalorder %s19, 0
      %p103 = por %p101, %p102
      %p104 = scmp.ne.s32.totalorder %s92, %s93
      %p105 = scmp.eq.s32.totalorder %s20, 1
      %p106 = por %p104, %p105
      %p108 = scmp.ne.s32.totalorder %s93, %s107
      %p109 = scmp.eq.s32.totalorder %s20, 0
      %p110 = por %p108, %p109
      %s112 = sadd.s32 %s111, 1
      %p115 = scmp.eq.s32.totalorder %s14, 1
      %p116 = scmp.ne.s32.totalorder %s111, %s113
      %p117 = scmp.eq.s32.totalorder %s14, 0
      %p118 = por %p116, %p117
      %p119 = scmp.ne.s32.totalorder %s111, %s113
      %p120 = scmp.eq.s32.totalorder %s19, 1
      %p121 = por %p119, %p120
      %p122 = scmp.ne.s32.totalorder %s113, %s114
      %p123 = scmp.eq.s32.totalorder %s19, 0
      %p124 = por %p122, %p123
      %p125 = scmp.ne.s32.totalorder %s113, %s114
      %p126 = scmp.eq.s32.totalorder %s20, 1
      %p127 = por %p125, %p126
      %p129 = scmp.ne.s32.totalorder %s114, %s128
      %p130 = scmp.eq.s32.totalorder %s20, 0
      %p131 = por %p129, %p130
      %s132 = ssub.s32 %s14, %s21
      %p133 = scmp.eq.s32.totalorder %s132, 0
      %s135 = sadd.s32 %s134, 1
      %s136 = scalar_select %p133, %s134, %s135
      %p139 = pneg %p133
      %p140 = scmp.eq.s32.totalorder %s14, 1
      %p141 = por %p139, %p140
      %p142 = scmp.ne.s32.totalorder %s134, %s137
      %p143 = scmp.eq.s32.totalorder %s14, 0
      %p144 = por %p142, %p143
      %p145 = scmp.ne.s32.totalorder %s134, %s137
      %p146 = scmp.eq.s32.totalorder %s19, 1
      %p147 = por %p145, %p146
      %p148 = scmp.ne.s32.totalorder %s137, %s138
      %p149 = scmp.eq.s32.totalorder %s19, 0
      %p150 = por %p148, %p149
      %p151 = scmp.ne.s32.totalorder %s137, %s138
      %p152 = scmp.eq.s32.totalorder %s20, 1
      %p153 = por %p151, %p152
      %p155 = scmp.ne.s32.totalorder %s138, %s154
      %p156 = scmp.eq.s32.totalorder %s20, 0
      %p157 = por %p155, %p156
      %p158 = scmp.le.s32.totalorder 1, %s14
      %p159 = scmp.lt.s32.totalorder %s14, 3
      %p160 = pnand %p158, %p159
      %p161 = pneg %p160
      // Predicated region
      $region9: #{my_sequential_forward.1} parent=5 // pred_check
        _
      $region10: #{my_sequential_forward.1} parent=5 // pred_check_branch
        %163 = sbr.rel (%p160) target = $region12
      $region11: #{my_sequential_forward.1} parent=5 // pred_region
        %s164 = ssub.s32 %s14, 1
        // Predicated region
        $region13: #{my_sequential_forward.1} parent=11 // pred_check
          %p165 = pneg %p61
        $region14: #{my_sequential_forward.1} parent=11 // pred_check_branch
          %167 = sbr.rel (%p165) target = $region16
        $region15: #{my_sequential_forward.1} parent=11 // pred_region
          _
        $region16: #{my_sequential_forward.1} parent=11 // pred_fallthru
          _
        // Predicated region
        $region17: #{my_sequential_forward.1} parent=11 // pred_check
          %p168 = pneg %p82
        $region18: #{my_sequential_forward.1} parent=11 // pred_check_branch
          %170 = sbr.rel (%p168) target = $region20
        $region19: #{my_sequential_forward.1} parent=11 // pred_region
          _
        $region20: #{my_sequential_forward.1} parent=11 // pred_fallthru
          _
        // Predicated region
        $region21: #{my_sequential_forward.1} parent=11 // pred_check
          %p171 = pneg %p103
        $region22: #{my_sequential_forward.1} parent=11 // pred_check_branch
          %173 = sbr.rel (%p171) target = $region24
        $region23: #{my_sequential_forward.1} parent=11 // pred_region
          _
        $region24: #{my_sequential_forward.1} parent=11 // pred_fallthru
          _
        // Predicated region
        $region25: #{my_sequential_forward.1} parent=11 // pred_check
          %p174 = pneg %p124
        $region26: #{my_sequential_forward.1} parent=11 // pred_check_branch
          %176 = sbr.rel (%p174) target = $region28
        $region27: #{my_sequential_forward.1} parent=11 // pred_region
          _
        $region28: #{my_sequential_forward.1} parent=11 // pred_fallthru
          _
      $region12: #{my_sequential_forward.1} parent=5 // pred_fallthru
        _
      %p177 = scmp.lt.s32.totalorder %s14, 2
      // Predicated region
      $region29: #{my_sequential_forward.1} parent=5 // pred_check
        %p178 = pneg %p177
      $region30: #{my_sequential_forward.1} parent=5 // pred_check_branch
        %180 = sbr.rel (%p178) target = $region32
      $region31: #{my_sequential_forward.1} parent=5 // pred_region
        // Predicated region
        $region33: #{my_sequential_forward.1} parent=31 // pred_check
          %p181 = pneg %p34
        $region34: #{my_sequential_forward.1} parent=31 // pred_check_branch
          %183 = sbr.rel (%p181) target = $region36
        $region35: #{my_sequential_forward.1} parent=31 // pred_region
          %s184 = smul.u32 64, %s14
          %p185 = scmp.lt.s32.totalorder %s184, 127
          %s186 = scalar_select %p185, %s184, 127
          %s187 = smul.addr %s186, 4
          %s188 = scalar_lea.vmem %s0, %s187
          %s189 = smul.u32 64, %s14
        $region36: #{my_sequential_forward.1} parent=31 // pred_fallthru
          _
      $region32: #{my_sequential_forward.1} parent=5 // pred_fallthru
        _
      %p190 = scmp.le.s32.totalorder 1, %s14
      %p191 = scmp.lt.s32.totalorder %s14, 3
      %p192 = pnand %p190, %p191
      %p193 = pneg %p192
      // Predicated region
      $region37: #{my_sequential_forward.1} parent=5 // pred_check
        _
      $region38: #{my_sequential_forward.1} parent=5 // pred_check_branch
        %195 = sbr.rel (%p192) target = $region40
      $region39: #{my_sequential_forward.1} parent=5 // pred_region
        %s196 = ssub.s32 %s14, 1
        %s197 = smul.u32 64, %s19
        %p198 = scmp.lt.s32.totalorder %s197, 127
        %s199 = scalar_select %p198, %s197, 127
        %s200 = smul.addr %s199, 4
        %s201 = scalar_lea.vmem %s0, %s200
        %p202 = pneg %p40
        %p203 = pneg %p37
        %p204 = pneg %p61
        %p205 = pneg %p58
        %p206 = pneg %p82
        %p207 = pneg %p79
        %p208 = pneg %p103
        %p209 = pneg %p100
        %p210 = pneg %p124
        %p211 = pneg %p121
        %p212 = pneg %p150
        %p213 = pneg %p147
        %s214 = sand.u32 %s137, 1
        %s215 = scalar_lea.sflag [#allocation3], %s214
        %s216 = sand.u32 %s137, 1
        %s217 = smul.addr %s216, 256
        %s218 = scalar_lea.vmem [#allocation2], %s217
        %s219 = smul.u32 64, %s19
        %p220 = scmp.lt.s32.totalorder %s219, 127
        %s221 = scalar_select %p220, %s219, 127
        %s222 = smul.addr %s221, 4
        %s223 = scalar_lea.vmem %s0, %s222
        %s224 = smul.u32 64, %s19
        %s225 = smul.u32 64, %s19
        %v227 = vld [vmem:[%s223] sm:$0xf]
        %v228 = vld [vmem:[%s223 + $0x4] sm:$0xf]
        %v229 = vld [vmem:[%s223 + $0x8] sm:$0xf]
        %v230 = vld [vmem:[%s223 + $0xc] sm:$0xf]
        %v231 = vld [vmem:[%s223 + $0x10] sm:$0xf]
        %v232 = vld [vmem:[%s223 + $0x14] sm:$0xf]
        %v233 = vld [vmem:[%s223 + $0x18] sm:$0xf]
        %v234 = vld [vmem:[%s223 + $0x1c] sm:$0xf]
        %v235 = vld [vmem:[%s223 + $0x20] sm:$0xf]
        %v236 = vld [vmem:[%s223 + $0x24] sm:$0xf]
        %v237 = vld [vmem:[%s223 + $0x28] sm:$0xf]
        %v238 = vld [vmem:[%s223 + $0x2c] sm:$0xf]
        %v239 = vld [vmem:[%s223 + $0x30] sm:$0xf]
        %v240 = vld [vmem:[%s223 + $0x34] sm:$0xf]
        %v241 = vld [vmem:[%s223 + $0x38] sm:$0xf]
        %v242 = vld [vmem:[%s223 + $0x3c] sm:$0xf]
        %v243 = vld [vmem:[%s223 + $0x40] sm:$0xf]
        %v244 = vld [vmem:[%s223 + $0x44] sm:$0xf]
        %v245 = vld [vmem:[%s223 + $0x48] sm:$0xf]
        %v246 = vld [vmem:[%s223 + $0x4c] sm:$0xf]
        %v247 = vld [vmem:[%s223 + $0x50] sm:$0xf]
        %v248 = vld [vmem:[%s223 + $0x54] sm:$0xf]
        %v249 = vld [vmem:[%s223 + $0x58] sm:$0xf]
        %v250 = vld [vmem:[%s223 + $0x5c] sm:$0xf]
        %v251 = vld [vmem:[%s223 + $0x60] sm:$0xf]
        %v252 = vld [vmem:[%s223 + $0x64] sm:$0xf]
        %v253 = vld [vmem:[%s223 + $0x68] sm:$0xf]
        %v254 = vld [vmem:[%s223 + $0x6c] sm:$0xf]
        %v255 = vld [vmem:[%s223 + $0x70] sm:$0xf]
        %v256 = vld [vmem:[%s223 + $0x74] sm:$0xf]
        %v257 = vld [vmem:[%s223 + $0x78] sm:$0xf]
        %v258 = vld [vmem:[%s223 + $0x7c] sm:$0xf]
        %v259 = vld [vmem:[%s223 + $0x80] sm:$0xf]
        %v260 = vld [vmem:[%s223 + $0x84] sm:$0xf]
        %v261 = vld [vmem:[%s223 + $0x88] sm:$0xf]
        %v262 = vld [vmem:[%s223 + $0x8c] sm:$0xf]
        %v263 = vld [vmem:[%s223 + $0x90] sm:$0xf]
        %v264 = vld [vmem:[%s223 + $0x94] sm:$0xf]
        %v265 = vld [vmem:[%s223 + $0x98] sm:$0xf]
        %v266 = vld [vmem:[%s223 + $0x9c] sm:$0xf]
        %v267 = vld [vmem:[%s223 + $0xa0] sm:$0xf]
        %v268 = vld [vmem:[%s223 + $0xa4] sm:$0xf]
        %v269 = vld [vmem:[%s223 + $0xa8] sm:$0xf]
        %v270 = vld [vmem:[%s223 + $0xac] sm:$0xf]
        %v271 = vld [vmem:[%s223 + $0xb0] sm:$0xf]
        %v272 = vld [vmem:[%s223 + $0xb4] sm:$0xf]
        %v273 = vld [vmem:[%s223 + $0xb8] sm:$0xf]
        %v274 = vld [vmem:[%s223 + $0xbc] sm:$0xf]
        %v275 = vld [vmem:[%s223 + $0xc0] sm:$0xf]
        %v276 = vld [vmem:[%s223 + $0xc4] sm:$0xf]
        %v277 = vld [vmem:[%s223 + $0xc8] sm:$0xf]
        %v278 = vld [vmem:[%s223 + $0xcc] sm:$0xf]
        %v279 = vld [vmem:[%s223 + $0xd0] sm:$0xf]
        %v280 = vld [vmem:[%s223 + $0xd4] sm:$0xf]
        %v281 = vld [vmem:[%s223 + $0xd8] sm:$0xf]
        %v282 = vld [vmem:[%s223 + $0xdc] sm:$0xf]
        %v283 = vld [vmem:[%s223 + $0xe0] sm:$0xf]
        %v284 = vld [vmem:[%s223 + $0xe4] sm:$0xf]
        %v285 = vld [vmem:[%s223 + $0xe8] sm:$0xf]
        %v286 = vld [vmem:[%s223 + $0xec] sm:$0xf]
        %v287 = vld [vmem:[%s223 + $0xf0] sm:$0xf]
        %v288 = vld [vmem:[%s223 + $0xf4] sm:$0xf]
        %v289 = vld [vmem:[%s223 + $0xf8] sm:$0xf]
        %v290 = vld [vmem:[%s223 + $0xfc] sm:$0xf]
        %v291 = vld [vmem:[%s1] sm:$0xff]
        %v292 = vld [vmem:[%s1 + $0x8] sm:$0xff]
        %v293 = vld [vmem:[%s1 + $0x10] sm:$0xff]
        %v294 = vld [vmem:[%s1 + $0x18] sm:$0xff]
        %v295 = vld [vmem:[%s1 + $0x20] sm:$0xff]
        %v296 = vld [vmem:[%s1 + $0x28] sm:$0xff]
        %v297 = vld [vmem:[%s1 + $0x30] sm:$0xff]
        %v298 = vld [vmem:[%s1 + $0x38] sm:$0xff]
        %v299 = vld [vmem:[%s1 + $0x40] sm:$0xff]
        %v300 = vld [vmem:[%s1 + $0x48] sm:$0xff]
        %v301 = vld [vmem:[%s1 + $0x50] sm:$0xff]
        %v302 = vld [vmem:[%s1 + $0x58] sm:$0xff]
        %v303 = vld [vmem:[%s1 + $0x60] sm:$0xff]
        %v304 = vld [vmem:[%s1 + $0x68] sm:$0xff]
        %v305 = vld [vmem:[%s1 + $0x70] sm:$0xff]
        %v306 = vld [vmem:[%s1 + $0x78] sm:$0xff]
        %v307 = vld [vmem:[%s2] sm:$0x3]
        %v309 = vlaneseq
        %v310 = vshrl.u32 %v309, 7
        %v311 = vsub.s32 0, %v310
        %v312 = vrot.slane %v307, %v311
        %v313 = vlaneseq
        %v314 = vshrl.u32 %v313, 7
        %v315 = vsub.s32 1, %v314
        %v316 = vrot.slane %v307, %v315
        %v383 = vunpack.c.l.b16 %v227
        %v384 = vunpack.c.l.b16 %v228
        %v385 = vunpack.c.l.b16 %v229
        %v386 = vunpack.c.l.b16 %v230
        %v387 = vunpack.c.l.b16 %v231
        %v388 = vunpack.c.l.b16 %v232
        %v389 = vunpack.c.l.b16 %v233
        %v390 = vunpack.c.l.b16 %v234
        %v391 = vunpack.c.l.b16 %v235
        %v392 = vunpack.c.l.b16 %v236
        %v393 = vunpack.c.l.b16 %v237
        %v394 = vunpack.c.l.b16 %v238
        %v395 = vunpack.c.l.b16 %v239
        %v396 = vunpack.c.l.b16 %v240
        %v397 = vunpack.c.l.b16 %v241
        %v398 = vunpack.c.l.b16 %v242
        %v399 = vunpack.c.l.b16 %v243
        %v400 = vunpack.c.l.b16 %v244
        %v401 = vunpack.c.l.b16 %v245
        %v402 = vunpack.c.l.b16 %v246
        %v403 = vunpack.c.l.b16 %v247
        %v404 = vunpack.c.l.b16 %v248
        %v405 = vunpack.c.l.b16 %v249
        %v406 = vunpack.c.l.b16 %v250
        %v407 = vunpack.c.l.b16 %v251
        %v408 = vunpack.c.l.b16 %v252
        %v409 = vunpack.c.l.b16 %v253
        %v410 = vunpack.c.l.b16 %v254
        %v411 = vunpack.c.l.b16 %v255
        %v412 = vunpack.c.l.b16 %v256
        %v413 = vunpack.c.l.b16 %v257
        %v414 = vunpack.c.l.b16 %v258
        %v415 = vunpack.c.l.b16 %v259
        %v416 = vunpack.c.l.b16 %v260
        %v417 = vunpack.c.l.b16 %v261
        %v418 = vunpack.c.l.b16 %v262
        %v419 = vunpack.c.l.b16 %v263
        %v420 = vunpack.c.l.b16 %v264
        %v421 = vunpack.c.l.b16 %v265
        %v422 = vunpack.c.l.b16 %v266
        %v423 = vunpack.c.l.b16 %v267
        %v424 = vunpack.c.l.b16 %v268
        %v425 = vunpack.c.l.b16 %v269
        %v426 = vunpack.c.l.b16 %v270
        %v427 = vunpack.c.l.b16 %v271
        %v428 = vunpack.c.l.b16 %v272
        %v429 = vunpack.c.l.b16 %v273
        %v430 = vunpack.c.l.b16 %v274
        %v431 = vunpack.c.l.b16 %v275
        %v432 = vunpack.c.l.b16 %v276
        %v433 = vunpack.c.l.b16 %v277
        %v434 = vunpack.c.l.b16 %v278
        %v435 = vunpack.c.l.b16 %v279
        %v436 = vunpack.c.l.b16 %v280
        %v437 = vunpack.c.l.b16 %v281
        %v438 = vunpack.c.l.b16 %v282
        %v439 = vunpack.c.l.b16 %v283
        %v440 = vunpack.c.l.b16 %v284
        %v441 = vunpack.c.l.b16 %v285
        %v442 = vunpack.c.l.b16 %v286
        %v443 = vunpack.c.l.b16 %v287
        %v444 = vunpack.c.l.b16 %v288
        %v445 = vunpack.c.l.b16 %v289
        %v446 = vunpack.c.l.b16 %v290
        %v447 = vpack.c.b16 %v384, %v383
        %v448 = vpack.c.b16 %v386, %v385
        %v449 = vpack.c.b16 %v388, %v387
        %v450 = vpack.c.b16 %v390, %v389
        %v451 = vpack.c.b16 %v392, %v391
        %v452 = vpack.c.b16 %v394, %v393
        %v453 = vpack.c.b16 %v396, %v395
        %v454 = vpack.c.b16 %v398, %v397
        %v455 = vpack.c.b16 %v400, %v399
        %v456 = vpack.c.b16 %v402, %v401
        %v457 = vpack.c.b16 %v404, %v403
        %v458 = vpack.c.b16 %v406, %v405
        %v459 = vpack.c.b16 %v408, %v407
        %v460 = vpack.c.b16 %v410, %v409
        %v461 = vpack.c.b16 %v412, %v411
        %v462 = vpack.c.b16 %v414, %v413
        %v463 = vpack.c.b16 %v416, %v415
        %v464 = vpack.c.b16 %v418, %v417
        %v465 = vpack.c.b16 %v420, %v419
        %v466 = vpack.c.b16 %v422, %v421
        %v467 = vpack.c.b16 %v424, %v423
        %v468 = vpack.c.b16 %v426, %v425
        %v469 = vpack.c.b16 %v428, %v427
        %v470 = vpack.c.b16 %v430, %v429
        %v471 = vpack.c.b16 %v432, %v431
        %v472 = vpack.c.b16 %v434, %v433
        %v473 = vpack.c.b16 %v436, %v435
        %v474 = vpack.c.b16 %v438, %v437
        %v475 = vpack.c.b16 %v440, %v439
        %v476 = vpack.c.b16 %v442, %v441
        %v477 = vpack.c.b16 %v444, %v443
        %v478 = vpack.c.b16 %v446, %v445
        %v527 = vunpack.c.l.b16 %v291
        %v528 = vunpack.c.h.b16 %v291
        %v529 = vunpack.c.l.b16 %v292
        %v530 = vunpack.c.h.b16 %v292
        %v531 = vunpack.c.l.b16 %v293
        %v532 = vunpack.c.h.b16 %v293
        %v533 = vunpack.c.l.b16 %v294
        %v534 = vunpack.c.h.b16 %v294
        %v535 = vunpack.c.l.b16 %v295
        %v536 = vunpack.c.h.b16 %v295
        %v537 = vunpack.c.l.b16 %v296
        %v538 = vunpack.c.h.b16 %v296
        %v539 = vunpack.c.l.b16 %v297
        %v540 = vunpack.c.h.b16 %v297
        %v541 = vunpack.c.l.b16 %v298
        %v542 = vunpack.c.h.b16 %v298
        %v543 = vunpack.c.l.b16 %v299
        %v544 = vunpack.c.h.b16 %v299
        %v545 = vunpack.c.l.b16 %v300
        %v546 = vunpack.c.h.b16 %v300
        %v547 = vunpack.c.l.b16 %v301
        %v548 = vunpack.c.h.b16 %v301
        %v549 = vunpack.c.l.b16 %v302
        %v550 = vunpack.c.h.b16 %v302
        %v551 = vunpack.c.l.b16 %v303
        %v552 = vunpack.c.h.b16 %v303
        %v553 = vunpack.c.l.b16 %v304
        %v554 = vunpack.c.h.b16 %v304
        %v555 = vunpack.c.l.b16 %v305
        %v556 = vunpack.c.h.b16 %v305
        %v557 = vunpack.c.l.b16 %v306
        %v558 = vunpack.c.h.b16 %v306
        %v559 = vpack.c.b16 %v529, %v527
        %v560 = vpack.c.b16 %v530, %v528
        %v561 = vpack.c.b16 %v533, %v531
        %v562 = vpack.c.b16 %v534, %v532
        %v563 = vpack.c.b16 %v537, %v535
        %v564 = vpack.c.b16 %v538, %v536
        %v565 = vpack.c.b16 %v541, %v539
        %v566 = vpack.c.b16 %v542, %v540
        %v567 = vpack.c.b16 %v545, %v543
        %v568 = vpack.c.b16 %v546, %v544
        %v569 = vpack.c.b16 %v549, %v547
        %v570 = vpack.c.b16 %v550, %v548
        %v571 = vpack.c.b16 %v553, %v551
        %v572 = vpack.c.b16 %v554, %v552
        %v573 = vpack.c.b16 %v557, %v555
        %v574 = vpack.c.b16 %v558, %v556
        %591 = vmatprep.subr.bf16.mxu0 %v560
        %592 = vmatpush1.bf16.msra.mxu0 %v559
        %593 = vmatprep.subr.bf16.mxu0 %v562
        %594 = vmatpush1.bf16.msra.mxu0 %v561
        %595 = vmatprep.subr.bf16.mxu0 %v564
        %596 = vmatpush1.bf16.msra.mxu0 %v563
        %597 = vmatprep.subr.bf16.mxu0 %v566
        %598 = vmatpush1.bf16.msra.mxu0 %v565
        %599 = vmatprep.subr.bf16.mxu0 %v568
        %600 = vmatpush1.bf16.msra.mxu0 %v567
        %601 = vmatprep.subr.bf16.mxu0 %v570
        %602 = vmatpush1.bf16.msra.mxu0 %v569
        %603 = vmatprep.subr.bf16.mxu0 %v572
        %604 = vmatpush1.bf16.msra.mxu0 %v571
        %605 = vmatprep.subr.bf16.mxu0 %v574
        %606 = vmatpush1.bf16.msra.mxu0 %v573
        %607 = vmatprep.subr.bf16.mxu0 0
        %608 = vmatpush1.bf16.msra.mxu0 0
        %609 = vmatprep.subr.bf16.mxu0 0
        %610 = vmatpush1.bf16.msra.mxu0 0
        %611 = vmatprep.subr.bf16.mxu0 0
        %612 = vmatpush1.bf16.msra.mxu0 0
        %613 = vmatprep.subr.bf16.mxu0 0
        %614 = vmatpush1.bf16.msra.mxu0 0
        %615 = vmatprep.subr.bf16.mxu0 0
        %616 = vmatpush1.bf16.msra.mxu0 0
        %617 = vmatprep.subr.bf16.mxu0 0
        %618 = vmatpush1.bf16.msra.mxu0 0
        %619 = vmatprep.subr.bf16.mxu0 0
        %620 = vmatpush1.bf16.msra.mxu0 0
        %621 = vmatprep.subr.bf16.mxu0 0
        %622 = vmatpush1.bf16.msra.mxu0 0
        %623 = vmatprep.mubr.bf16.mxu0 0
        %624 = vmatmul.mubr.bf16.gmra.mrb[0].mxu0 %v447
        %v625 = vpop.f32.mrb[0].mxu0
        %v626 = vadd.f32 %v312, %v625
        %v627 = vpop.f32.mrb[0].mxu0
        %v628 = vadd.f32 %v316, %v627
        %v629 = vpop.f32.mrb[0].mxu0
        %v630 = vadd.f32 %v312, %v629
        %v631 = vpop.f32.mrb[0].mxu0
        %v632 = vadd.f32 %v316, %v631
        %633 = vmatprep.mubr.bf16.mxu0 0
        %634 = vmatmul.mubr.bf16.gmra.mrb[0].mxu0 %v448
        %v635 = vpop.f32.mrb[0].mxu0
        %v636 = vadd.f32 %v312, %v635
        %v637 = vpop.f32.mrb[0].mxu0
        %v638 = vadd.f32 %v316, %v637
        %v639 = vpop.f32.mrb[0].mxu0
        %v640 = vadd.f32 %v312, %v639
        %v641 = vpop.f32.mrb[0].mxu0
        %v642 = vadd.f32 %v316, %v641
        %643 = vmatprep.mubr.bf16.mxu0 0
        %644 = vmatmul.mubr.bf16.gmra.mrb[0].mxu0 %v449
        %v645 = vpop.f32.mrb[0].mxu0
        %v646 = vadd.f32 %v312, %v645
        %v647 = vpop.f32.mrb[0].mxu0
        %v648 = vadd.f32 %v316, %v647
        %v649 = vpop.f32.mrb[0].mxu0
        %v650 = vadd.f32 %v312, %v649
        %v651 = vpop.f32.mrb[0].mxu0
        %v652 = vadd.f32 %v316, %v651
        %653 = vmatprep.mubr.bf16.mxu0 0
        %654 = vmatmul.mubr.bf16.gmra.mrb[0].mxu0 %v450
        %v655 = vpop.f32.mrb[0].mxu0
        %v656 = vadd.f32 %v312, %v655
        %v657 = vpop.f32.mrb[0].mxu0
        %v658 = vadd.f32 %v316, %v657
        %v659 = vpop.f32.mrb[0].mxu0
        %v660 = vadd.f32 %v312, %v659
        %v661 = vpop.f32.mrb[0].mxu0
        %v662 = vadd.f32 %v316, %v661
        %663 = vmatprep.mubr.bf16.mxu0 0
        %664 = vmatmul.mubr.bf16.gmra.mrb[0].mxu0 %v451
        %v665 = vpop.f32.mrb[0].mxu0
        %v666 = vadd.f32 %v312, %v665
        %v667 = vpop.f32.mrb[0].mxu0
        %v668 = vadd.f32 %v316, %v667
        %v669 = vpop.f32.mrb[0].mxu0
        %v670 = vadd.f32 %v312, %v669
        %v671 = vpop.f32.mrb[0].mxu0
        %v672 = vadd.f32 %v316, %v671
        %673 = vmatprep.mubr.bf16.mxu0 0
        %674 = vmatmul.mubr.bf16.gmra.mrb[0].mxu0 %v452
        %v675 = vpop.f32.mrb[0].mxu0
        %v676 = vadd.f32 %v312, %v675
        %v677 = vpop.f32.mrb[0].mxu0
        %v678 = vadd.f32 %v316, %v677
        %v679 = vpop.f32.mrb[0].mxu0
        %v680 = vadd.f32 %v312, %v679
        %v681 = vpop.f32.mrb[0].mxu0
        %v682 = vadd.f32 %v316, %v681
        %683 = vmatprep.mubr.bf16.mxu0 0
        %684 = vmatmul.mubr.bf16.gmra.mrb[0].mxu0 %v453
        %v685 = vpop.f32.mrb[0].mxu0
        %v686 = vadd.f32 %v312, %v685
        %v687 = vpop.f32.mrb[0].mxu0
        %v688 = vadd.f32 %v316, %v687
        %v689 = vpop.f32.mrb[0].mxu0
        %v690 = vadd.f32 %v312, %v689
        %v691 = vpop.f32.mrb[0].mxu0
        %v692 = vadd.f32 %v316, %v691
        %693 = vmatprep.mubr.bf16.mxu0 0
        %694 = vmatmul.mubr.bf16.gmra.mrb[0].mxu0 %v454
        %v695 = vpop.f32.mrb[0].mxu0
        %v696 = vadd.f32 %v312, %v695
        %v697 = vpop.f32.mrb[0].mxu0
        %v698 = vadd.f32 %v316, %v697
        %v699 = vpop.f32.mrb[0].mxu0
        %v700 = vadd.f32 %v312, %v699
        %v701 = vpop.f32.mrb[0].mxu0
        %v702 = vadd.f32 %v316, %v701
        %703 = vmatprep.mubr.bf16.mxu0 0
        %704 = vmatmul.mubr.bf16.gmra.mrb[0].mxu0 %v455
        %v705 = vpop.f32.mrb[0].mxu0
        %v706 = vadd.f32 %v312, %v705
        %v707 = vpop.f32.mrb[0].mxu0
        %v708 = vadd.f32 %v316, %v707
        %v709 = vpop.f32.mrb[0].mxu0
        %v710 = vadd.f32 %v312, %v709
        %v711 = vpop.f32.mrb[0].mxu0
        %v712 = vadd.f32 %v316, %v711
        %713 = vmatprep.mubr.bf16.mxu0 0
        %714 = vmatmul.mubr.bf16.gmra.mrb[0].mxu0 %v456
        %v715 = vpop.f32.mrb[0].mxu0
        %v716 = vadd.f32 %v312, %v715
        %v717 = vpop.f32.mrb[0].mxu0
        %v718 = vadd.f32 %v316, %v717
        %v719 = vpop.f32.mrb[0].mxu0
        %v720 = vadd.f32 %v312, %v719
        %v721 = vpop.f32.mrb[0].mxu0
        %v722 = vadd.f32 %v316, %v721
        %723 = vmatprep.mubr.bf16.mxu0 0
        %724 = vmatmul.mubr.bf16.gmra.mrb[0].mxu0 %v457
        %v725 = vpop.f32.mrb[0].mxu0
        %v726 = vadd.f32 %v312, %v725
        %v727 = vpop.f32.mrb[0].mxu0
        %v728 = vadd.f32 %v316, %v727
        %v729 = vpop.f32.mrb[0].mxu0
        %v730 = vadd.f32 %v312, %v729
        %v731 = vpop.f32.mrb[0].mxu0
        %v732 = vadd.f32 %v316, %v731
        %733 = vmatprep.mubr.bf16.mxu0 0
        %734 = vmatmul.mubr.bf16.gmra.mrb[0].mxu0 %v458
        %v735 = vpop.f32.mrb[0].mxu0
        %v736 = vadd.f32 %v312, %v735
        %v737 = vpop.f32.mrb[0].mxu0
        %v738 = vadd.f32 %v316, %v737
        %v739 = vpop.f32.mrb[0].mxu0
        %v740 = vadd.f32 %v312, %v739
        %v741 = vpop.f32.mrb[0].mxu0
        %v742 = vadd.f32 %v316, %v741
        %743 = vmatprep.mubr.bf16.mxu0 0
        %744 = vmatmul.mubr.bf16.gmra.mrb[0].mxu0 %v459
        %v745 = vpop.f32.mrb[0].mxu0
        %v746 = vadd.f32 %v312, %v745
        %v747 = vpop.f32.mrb[0].mxu0
        %v748 = vadd.f32 %v316, %v747
        %v749 = vpop.f32.mrb[0].mxu0
        %v750 = vadd.f32 %v312, %v749
        %v751 = vpop.f32.mrb[0].mxu0
        %v752 = vadd.f32 %v316, %v751
        %753 = vmatprep.mubr.bf16.mxu0 0
        %754 = vmatmul.mubr.bf16.gmra.mrb[0].mxu0 %v460
        %v755 = vpop.f32.mrb[0].mxu0
        %v756 = vadd.f32 %v312, %v755
        %v757 = vpop.f32.mrb[0].mxu0
        %v758 = vadd.f32 %v316, %v757
        %v759 = vpop.f32.mrb[0].mxu0
        %v760 = vadd.f32 %v312, %v759
        %v761 = vpop.f32.mrb[0].mxu0
        %v762 = vadd.f32 %v316, %v761
        %763 = vmatprep.mubr.bf16.mxu0 0
        %764 = vmatmul.mubr.bf16.gmra.mrb[0].mxu0 %v461
        %v765 = vpop.f32.mrb[0].mxu0
        %v766 = vadd.f32 %v312, %v765
        %v767 = vpop.f32.mrb[0].mxu0
        %v768 = vadd.f32 %v316, %v767
        %v769 = vpop.f32.mrb[0].mxu0
        %v770 = vadd.f32 %v312, %v769
        %v771 = vpop.f32.mrb[0].mxu0
        %v772 = vadd.f32 %v316, %v771
        %773 = vmatprep.mubr.bf16.mxu0 0
        %774 = vmatmul.mubr.bf16.gmra.mrb[0].mxu0 %v462
        %v775 = vpop.f32.mrb[0].mxu0
        %v776 = vadd.f32 %v312, %v775
        %v777 = vpop.f32.mrb[0].mxu0
        %v778 = vadd.f32 %v316, %v777
        %v779 = vpop.f32.mrb[0].mxu0
        %v780 = vadd.f32 %v312, %v779
        %v781 = vpop.f32.mrb[0].mxu0
        %v782 = vadd.f32 %v316, %v781
        %783 = vmatprep.mubr.bf16.mxu0 0
        %784 = vmatmul.mubr.bf16.gmra.mrb[0].mxu0 %v463
        %v785 = vpop.f32.mrb[0].mxu0
        %v786 = vadd.f32 %v312, %v785
        %v787 = vpop.f32.mrb[0].mxu0
        %v788 = vadd.f32 %v316, %v787
        %v789 = vpop.f32.mrb[0].mxu0
        %v790 = vadd.f32 %v312, %v789
        %v791 = vpop.f32.mrb[0].mxu0
        %v792 = vadd.f32 %v316, %v791
        %793 = vmatprep.mubr.bf16.mxu0 0
        %794 = vmatmul.mubr.bf16.gmra.mrb[0].mxu0 %v464
        %v795 = vpop.f32.mrb[0].mxu0
        %v796 = vadd.f32 %v312, %v795
        %v797 = vpop.f32.mrb[0].mxu0
        %v798 = vadd.f32 %v316, %v797
        %v799 = vpop.f32.mrb[0].mxu0
        %v800 = vadd.f32 %v312, %v799
        %v801 = vpop.f32.mrb[0].mxu0
        %v802 = vadd.f32 %v316, %v801
        %803 = vmatprep.mubr.bf16.mxu0 0
        %804 = vmatmul.mubr.bf16.gmra.mrb[0].mxu0 %v465
        %v805 = vpop.f32.mrb[0].mxu0
        %v806 = vadd.f32 %v312, %v805
        %v807 = vpop.f32.mrb[0].mxu0
        %v808 = vadd.f32 %v316, %v807
        %v809 = vpop.f32.mrb[0].mxu0
        %v810 = vadd.f32 %v312, %v809
        %v811 = vpop.f32.mrb[0].mxu0
        %v812 = vadd.f32 %v316, %v811
        %813 = vmatprep.mubr.bf16.mxu0 0
        %814 = vmatmul.mubr.bf16.gmra.mrb[0].mxu0 %v466
        %v815 = vpop.f32.mrb[0].mxu0
        %v816 = vadd.f32 %v312, %v815
        %v817 = vpop.f32.mrb[0].mxu0
        %v818 = vadd.f32 %v316, %v817
        %v819 = vpop.f32.mrb[0].mxu0
        %v820 = vadd.f32 %v312, %v819
        %v821 = vpop.f32.mrb[0].mxu0
        %v822 = vadd.f32 %v316, %v821
        %823 = vmatprep.mubr.bf16.mxu0 0
        %824 = vmatmul.mubr.bf16.gmra.mrb[0].mxu0 %v467
        %v825 = vpop.f32.mrb[0].mxu0
        %v826 = vadd.f32 %v312, %v825
        %v827 = vpop.f32.mrb[0].mxu0
        %v828 = vadd.f32 %v316, %v827
        %v829 = vpop.f32.mrb[0].mxu0
        %v830 = vadd.f32 %v312, %v829
        %v831 = vpop.f32.mrb[0].mxu0
        %v832 = vadd.f32 %v316, %v831
        %833 = vmatprep.mubr.bf16.mxu0 0
        %834 = vmatmul.mubr.bf16.gmra.mrb[0].mxu0 %v468
        %v835 = vpop.f32.mrb[0].mxu0
        %v836 = vadd.f32 %v312, %v835
        %v837 = vpop.f32.mrb[0].mxu0
        %v838 = vadd.f32 %v316, %v837
        %v839 = vpop.f32.mrb[0].mxu0
        %v840 = vadd.f32 %v312, %v839
        %v841 = vpop.f32.mrb[0].mxu0
        %v842 = vadd.f32 %v316, %v841
        %843 = vmatprep.mubr.bf16.mxu0 0
        %844 = vmatmul.mubr.bf16.gmra.mrb[0].mxu0 %v469
        %v845 = vpop.f32.mrb[0].mxu0
        %v846 = vadd.f32 %v312, %v845
        %v847 = vpop.f32.mrb[0].mxu0
        %v848 = vadd.f32 %v316, %v847
        %v849 = vpop.f32.mrb[0].mxu0
        %v850 = vadd.f32 %v312, %v849
        %v851 = vpop.f32.mrb[0].mxu0
        %v852 = vadd.f32 %v316, %v851
        %853 = vmatprep.mubr.bf16.mxu0 0
        %854 = vmatmul.mubr.bf16.gmra.mrb[0].mxu0 %v470
        %v855 = vpop.f32.mrb[0].mxu0
        %v856 = vadd.f32 %v312, %v855
        %v857 = vpop.f32.mrb[0].mxu0
        %v858 = vadd.f32 %v316, %v857
        %v859 = vpop.f32.mrb[0].mxu0
        %v860 = vadd.f32 %v312, %v859
        %v861 = vpop.f32.mrb[0].mxu0
        %v862 = vadd.f32 %v316, %v861
        %863 = vmatprep.mubr.bf16.mxu0 0
        %864 = vmatmul.mubr.bf16.gmra.mrb[0].mxu0 %v471
        %v865 = vpop.f32.mrb[0].mxu0
        %v866 = vadd.f32 %v312, %v865
        %v867 = vpop.f32.mrb[0].mxu0
        %v868 = vadd.f32 %v316, %v867
        %v869 = vpop.f32.mrb[0].mxu0
        %v870 = vadd.f32 %v312, %v869
        %v871 = vpop.f32.mrb[0].mxu0
        %v872 = vadd.f32 %v316, %v871
        %873 = vmatprep.mubr.bf16.mxu0 0
        %874 = vmatmul.mubr.bf16.gmra.mrb[0].mxu0 %v472
        %v875 = vpop.f32.mrb[0].mxu0
        %v876 = vadd.f32 %v312, %v875
        %v877 = vpop.f32.mrb[0].mxu0
        %v878 = vadd.f32 %v316, %v877
        %v879 = vpop.f32.mrb[0].mxu0
        %v880 = vadd.f32 %v312, %v879
        %v881 = vpop.f32.mrb[0].mxu0
        %v882 = vadd.f32 %v316, %v881
        %883 = vmatprep.mubr.bf16.mxu0 0
        %884 = vmatmul.mubr.bf16.gmra.mrb[0].mxu0 %v473
        %v885 = vpop.f32.mrb[0].mxu0
        %v886 = vadd.f32 %v312, %v885
        %v887 = vpop.f32.mrb[0].mxu0
        %v888 = vadd.f32 %v316, %v887
        %v889 = vpop.f32.mrb[0].mxu0
        %v890 = vadd.f32 %v312, %v889
        %v891 = vpop.f32.mrb[0].mxu0
        %v892 = vadd.f32 %v316, %v891
        %893 = vmatprep.mubr.bf16.mxu0 0
        %894 = vmatmul.mubr.bf16.gmra.mrb[0].mxu0 %v474
        %v895 = vpop.f32.mrb[0].mxu0
        %v896 = vadd.f32 %v312, %v895
        %v897 = vpop.f32.mrb[0].mxu0
        %v898 = vadd.f32 %v316, %v897
        %v899 = vpop.f32.mrb[0].mxu0
        %v900 = vadd.f32 %v312, %v899
        %v901 = vpop.f32.mrb[0].mxu0
        %v902 = vadd.f32 %v316, %v901
        %903 = vmatprep.mubr.bf16.mxu0 0
        %904 = vmatmul.mubr.bf16.gmra.mrb[0].mxu0 %v475
        %v905 = vpop.f32.mrb[0].mxu0
        %v906 = vadd.f32 %v312, %v905
        %v907 = vpop.f32.mrb[0].mxu0
        %v908 = vadd.f32 %v316, %v907
        %v909 = vpop.f32.mrb[0].mxu0
        %v910 = vadd.f32 %v312, %v909
        %v911 = vpop.f32.mrb[0].mxu0
        %v912 = vadd.f32 %v316, %v911
        %913 = vmatprep.mubr.bf16.mxu0 0
        %914 = vmatmul.mubr.bf16.gmra.mrb[0].mxu0 %v476
        %v915 = vpop.f32.mrb[0].mxu0
        %v916 = vadd.f32 %v312, %v915
        %v917 = vpop.f32.mrb[0].mxu0
        %v918 = vadd.f32 %v316, %v917
        %v919 = vpop.f32.mrb[0].mxu0
        %v920 = vadd.f32 %v312, %v919
        %v921 = vpop.f32.mrb[0].mxu0
        %v922 = vadd.f32 %v316, %v921
        %923 = vmatprep.mubr.bf16.mxu0 0
        %924 = vmatmul.mubr.bf16.gmra.mrb[0].mxu0 %v477
        %v925 = vpop.f32.mrb[0].mxu0
        %v926 = vadd.f32 %v312, %v925
        %v927 = vpop.f32.mrb[0].mxu0
        %v928 = vadd.f32 %v316, %v927
        %v929 = vpop.f32.mrb[0].mxu0
        %v930 = vadd.f32 %v312, %v929
        %v931 = vpop.f32.mrb[0].mxu0
        %v932 = vadd.f32 %v316, %v931
        %933 = vmatprep.mubr.bf16.mxu0 0
        %934 = vmatmul.mubr.bf16.gmra.mrb[0].mxu0 %v478
        %v935 = vpop.f32.mrb[0].mxu0
        %v936 = vadd.f32 %v312, %v935
        %v937 = vpop.f32.mrb[0].mxu0
        %v938 = vadd.f32 %v316, %v937
        %v939 = vpop.f32.mrb[0].mxu0
        %v940 = vadd.f32 %v312, %v939
        %v941 = vpop.f32.mrb[0].mxu0
        %v942 = vadd.f32 %v316, %v941
        %943 = vdwg.mxu0
        %v944 = vmax.f32 %v626, 0.0
        %v945 = vmax.f32 %v628, 0.0
        %v946 = vmax.f32 %v630, 0.0
        %v947 = vmax.f32 %v632, 0.0
        %v948 = vmax.f32 %v636, 0.0
        %v949 = vmax.f32 %v638, 0.0
        %v950 = vmax.f32 %v640, 0.0
        %v951 = vmax.f32 %v642, 0.0
        %v952 = vmax.f32 %v646, 0.0
        %v953 = vmax.f32 %v648, 0.0
        %v954 = vmax.f32 %v650, 0.0
        %v955 = vmax.f32 %v652, 0.0
        %v956 = vmax.f32 %v656, 0.0
        %v957 = vmax.f32 %v658, 0.0
        %v958 = vmax.f32 %v660, 0.0
        %v959 = vmax.f32 %v662, 0.0
        %v960 = vmax.f32 %v666, 0.0
        %v961 = vmax.f32 %v668, 0.0
        %v962 = vmax.f32 %v670, 0.0
        %v963 = vmax.f32 %v672, 0.0
        %v964 = vmax.f32 %v676, 0.0
        %v965 = vmax.f32 %v678, 0.0
        %v966 = vmax.f32 %v680, 0.0
        %v967 = vmax.f32 %v682, 0.0
        %v968 = vmax.f32 %v686, 0.0
        %v969 = vmax.f32 %v688, 0.0
        %v970 = vmax.f32 %v690, 0.0
        %v971 = vmax.f32 %v692, 0.0
        %v972 = vmax.f32 %v696, 0.0
        %v973 = vmax.f32 %v698, 0.0
        %v974 = vmax.f32 %v700, 0.0
        %v975 = vmax.f32 %v702, 0.0
        %v976 = vmax.f32 %v706, 0.0
        %v977 = vmax.f32 %v708, 0.0
        %v978 = vmax.f32 %v710, 0.0
        %v979 = vmax.f32 %v712, 0.0
        %v980 = vmax.f32 %v716, 0.0
        %v981 = vmax.f32 %v718, 0.0
        %v982 = vmax.f32 %v720, 0.0
        %v983 = vmax.f32 %v722, 0.0
        %v984 = vmax.f32 %v726, 0.0
        %v985 = vmax.f32 %v728, 0.0
        %v986 = vmax.f32 %v730, 0.0
        %v987 = vmax.f32 %v732, 0.0
        %v988 = vmax.f32 %v736, 0.0
        %v989 = vmax.f32 %v738, 0.0
        %v990 = vmax.f32 %v740, 0.0
        %v991 = vmax.f32 %v742, 0.0
        %v992 = vmax.f32 %v746, 0.0
        %v993 = vmax.f32 %v748, 0.0
        %v994 = vmax.f32 %v750, 0.0
        %v995 = vmax.f32 %v752, 0.0
        %v996 = vmax.f32 %v756, 0.0
        %v997 = vmax.f32 %v758, 0.0
        %v998 = vmax.f32 %v760, 0.0
        %v999 = vmax.f32 %v762, 0.0
        %v1000 = vmax.f32 %v766, 0.0
        %v1001 = vmax.f32 %v768, 0.0
        %v1002 = vmax.f32 %v770, 0.0
        %v1003 = vmax.f32 %v772, 0.0
        %v1004 = vmax.f32 %v776, 0.0
        %v1005 = vmax.f32 %v778, 0.0
        %v1006 = vmax.f32 %v780, 0.0
        %v1007 = vmax.f32 %v782, 0.0
        %v1008 = vmax.f32 %v786, 0.0
        %v1009 = vmax.f32 %v788, 0.0
        %v1010 = vmax.f32 %v790, 0.0
        %v1011 = vmax.f32 %v792, 0.0
        %v1012 = vmax.f32 %v796, 0.0
        %v1013 = vmax.f32 %v798, 0.0
        %v1014 = vmax.f32 %v800, 0.0
        %v1015 = vmax.f32 %v802, 0.0
        %v1016 = vmax.f32 %v806, 0.0
        %v1017 = vmax.f32 %v808, 0.0
        %v1018 = vmax.f32 %v810, 0.0
        %v1019 = vmax.f32 %v812, 0.0
        %v1020 = vmax.f32 %v816, 0.0
        %v1021 = vmax.f32 %v818, 0.0
        %v1022 = vmax.f32 %v820, 0.0
        %v1023 = vmax.f32 %v822, 0.0
        %v1024 = vmax.f32 %v826, 0.0
        %v1025 = vmax.f32 %v828, 0.0
        %v1026 = vmax.f32 %v830, 0.0
        %v1027 = vmax.f32 %v832, 0.0
        %v1028 = vmax.f32 %v836, 0.0
        %v1029 = vmax.f32 %v838, 0.0
        %v1030 = vmax.f32 %v840, 0.0
        %v1031 = vmax.f32 %v842, 0.0
        %v1032 = vmax.f32 %v846, 0.0
        %v1033 = vmax.f32 %v848, 0.0
        %v1034 = vmax.f32 %v850, 0.0
        %v1035 = vmax.f32 %v852, 0.0
        %v1036 = vmax.f32 %v856, 0.0
        %v1037 = vmax.f32 %v858, 0.0
        %v1038 = vmax.f32 %v860, 0.0
        %v1039 = vmax.f32 %v862, 0.0
        %v1040 = vmax.f32 %v866, 0.0
        %v1041 = vmax.f32 %v868, 0.0
        %v1042 = vmax.f32 %v870, 0.0
        %v1043 = vmax.f32 %v872, 0.0
        %v1044 = vmax.f32 %v876, 0.0
        %v1045 = vmax.f32 %v878, 0.0
        %v1046 = vmax.f32 %v880, 0.0
        %v1047 = vmax.f32 %v882, 0.0
        %v1048 = vmax.f32 %v886, 0.0
        %v1049 = vmax.f32 %v888, 0.0
        %v1050 = vmax.f32 %v890, 0.0
        %v1051 = vmax.f32 %v892, 0.0
        %v1052 = vmax.f32 %v896, 0.0
        %v1053 = vmax.f32 %v898, 0.0
        %v1054 = vmax.f32 %v900, 0.0
        %v1055 = vmax.f32 %v902, 0.0
        %v1056 = vmax.f32 %v906, 0.0
        %v1057 = vmax.f32 %v908, 0.0
        %v1058 = vmax.f32 %v910, 0.0
        %v1059 = vmax.f32 %v912, 0.0
        %v1060 = vmax.f32 %v916, 0.0
        %v1061 = vmax.f32 %v918, 0.0
        %v1062 = vmax.f32 %v920, 0.0
        %v1063 = vmax.f32 %v922, 0.0
        %v1064 = vmax.f32 %v926, 0.0
        %v1065 = vmax.f32 %v928, 0.0
        %v1066 = vmax.f32 %v930, 0.0
        %v1067 = vmax.f32 %v932, 0.0
        %v1068 = vmax.f32 %v936, 0.0
        %v1069 = vmax.f32 %v938, 0.0
        %v1070 = vmax.f32 %v940, 0.0
        %v1071 = vmax.f32 %v942, 0.0
        %v1072 = vpack.c.bf16 %v946, %v944
        %v1073 = vpack.c.bf16 %v947, %v945
        %v1074 = vpack.c.bf16 %v950, %v948
        %v1075 = vpack.c.bf16 %v951, %v949
        %v1076 = vpack.c.bf16 %v954, %v952
        %v1077 = vpack.c.bf16 %v955, %v953
        %v1078 = vpack.c.bf16 %v958, %v956
        %v1079 = vpack.c.bf16 %v959, %v957
        %v1080 = vpack.c.bf16 %v962, %v960
        %v1081 = vpack.c.bf16 %v963, %v961
        %v1082 = vpack.c.bf16 %v966, %v964
        %v1083 = vpack.c.bf16 %v967, %v965
        %v1084 = vpack.c.bf16 %v970, %v968
        %v1085 = vpack.c.bf16 %v971, %v969
        %v1086 = vpack.c.bf16 %v974, %v972
        %v1087 = vpack.c.bf16 %v975, %v973
        %v1088 = vpack.c.bf16 %v978, %v976
        %v1089 = vpack.c.bf16 %v979, %v977
        %v1090 = vpack.c.bf16 %v982, %v980
        %v1091 = vpack.c.bf16 %v983, %v981
        %v1092 = vpack.c.bf16 %v986, %v984
        %v1093 = vpack.c.bf16 %v987, %v985
        %v1094 = vpack.c.bf16 %v990, %v988
        %v1095 = vpack.c.bf16 %v991, %v989
        %v1096 = vpack.c.bf16 %v994, %v992
        %v1097 = vpack.c.bf16 %v995, %v993
        %v1098 = vpack.c.bf16 %v998, %v996
        %v1099 = vpack.c.bf16 %v999, %v997
        %v1100 = vpack.c.bf16 %v1002, %v1000
        %v1101 = vpack.c.bf16 %v1003, %v1001
        %v1102 = vpack.c.bf16 %v1006, %v1004
        %v1103 = vpack.c.bf16 %v1007, %v1005
        %v1104 = vpack.c.bf16 %v1010, %v1008
        %v1105 = vpack.c.bf16 %v1011, %v1009
        %v1106 = vpack.c.bf16 %v1014, %v1012
        %v1107 = vpack.c.bf16 %v1015, %v1013
        %v1108 = vpack.c.bf16 %v1018, %v1016
        %v1109 = vpack.c.bf16 %v1019, %v1017
        %v1110 = vpack.c.bf16 %v1022, %v1020
        %v1111 = vpack.c.bf16 %v1023, %v1021
        %v1112 = vpack.c.bf16 %v1026, %v1024
        %v1113 = vpack.c.bf16 %v1027, %v1025
        %v1114 = vpack.c.bf16 %v1030, %v1028
        %v1115 = vpack.c.bf16 %v1031, %v1029
        %v1116 = vpack.c.bf16 %v1034, %v1032
        %v1117 = vpack.c.bf16 %v1035, %v1033
        %v1118 = vpack.c.bf16 %v1038, %v1036
        %v1119 = vpack.c.bf16 %v1039, %v1037
        %v1120 = vpack.c.bf16 %v1042, %v1040
        %v1121 = vpack.c.bf16 %v1043, %v1041
        %v1122 = vpack.c.bf16 %v1046, %v1044
        %v1123 = vpack.c.bf16 %v1047, %v1045
        %v1124 = vpack.c.bf16 %v1050, %v1048
        %v1125 = vpack.c.bf16 %v1051, %v1049
        %v1126 = vpack.c.bf16 %v1054, %v1052
        %v1127 = vpack.c.bf16 %v1055, %v1053
        %v1128 = vpack.c.bf16 %v1058, %v1056
        %v1129 = vpack.c.bf16 %v1059, %v1057
        %v1130 = vpack.c.bf16 %v1062, %v1060
        %v1131 = vpack.c.bf16 %v1063, %v1061
        %v1132 = vpack.c.bf16 %v1066, %v1064
        %v1133 = vpack.c.bf16 %v1067, %v1065
        %v1134 = vpack.c.bf16 %v1070, %v1068
        %v1135 = vpack.c.bf16 %v1071, %v1069
        %v1136 = vld [vmem:[%s3] sm:$0xf]
        %v1137 = vld [vmem:[%s3 + $0x4] sm:$0xf]
        %v1138 = vld [vmem:[%s3 + $0x8] sm:$0xf]
        %v1139 = vld [vmem:[%s3 + $0xc] sm:$0xf]
        %v1140 = vld [vmem:[%s3 + $0x10] sm:$0xf]
        %v1141 = vld [vmem:[%s3 + $0x14] sm:$0xf]
        %v1142 = vld [vmem:[%s3 + $0x18] sm:$0xf]
        %v1143 = vld [vmem:[%s3 + $0x1c] sm:$0xf]
        %v1144 = vld [vmem:[%s3 + $0x20] sm:$0xf]
        %v1145 = vld [vmem:[%s3 + $0x24] sm:$0xf]
        %v1146 = vld [vmem:[%s3 + $0x28] sm:$0xf]
        %v1147 = vld [vmem:[%s3 + $0x2c] sm:$0xf]
        %v1148 = vld [vmem:[%s3 + $0x30] sm:$0xf]
        %v1149 = vld [vmem:[%s3 + $0x34] sm:$0xf]
        %v1150 = vld [vmem:[%s3 + $0x38] sm:$0xf]
        %v1151 = vld [vmem:[%s3 + $0x3c] sm:$0xf]
        %v1152 = vld [vmem:[%s3 + $0x40] sm:$0xf]
        %v1153 = vld [vmem:[%s3 + $0x44] sm:$0xf]
        %v1154 = vld [vmem:[%s3 + $0x48] sm:$0xf]
        %v1155 = vld [vmem:[%s3 + $0x4c] sm:$0xf]
        %v1156 = vld [vmem:[%s3 + $0x50] sm:$0xf]
        %v1157 = vld [vmem:[%s3 + $0x54] sm:$0xf]
        %v1158 = vld [vmem:[%s3 + $0x58] sm:$0xf]
        %v1159 = vld [vmem:[%s3 + $0x5c] sm:$0xf]
        %v1160 = vld [vmem:[%s3 + $0x60] sm:$0xf]
        %v1161 = vld [vmem:[%s3 + $0x64] sm:$0xf]
        %v1162 = vld [vmem:[%s3 + $0x68] sm:$0xf]
        %v1163 = vld [vmem:[%s3 + $0x6c] sm:$0xf]
        %v1164 = vld [vmem:[%s3 + $0x70] sm:$0xf]
        %v1165 = vld [vmem:[%s3 + $0x74] sm:$0xf]
        %v1166 = vld [vmem:[%s3 + $0x78] sm:$0xf]
        %v1167 = vld [vmem:[%s3 + $0x7c] sm:$0xf]
        %v1168 = vld [vmem:[%s4] sm:$0x1]
        %v1170 = vlaneseq
        %v1171 = vshrl.u32 %v1170, 7
        %v1172 = vsub.s32 0, %v1171
        %v1173 = vrot.slane %v1168, %v1172
        %v1207 = vunpack.c.l.b16 %v1136
        %v1208 = vunpack.c.l.b16 %v1137
        %v1209 = vunpack.c.l.b16 %v1138
        %v1210 = vunpack.c.l.b16 %v1139
        %v1211 = vunpack.c.l.b16 %v1140
        %v1212 = vunpack.c.l.b16 %v1141
        %v1213 = vunpack.c.l.b16 %v1142
        %v1214 = vunpack.c.l.b16 %v1143
        %v1215 = vunpack.c.l.b16 %v1144
        %v1216 = vunpack.c.l.b16 %v1145
        %v1217 = vunpack.c.l.b16 %v1146
        %v1218 = vunpack.c.l.b16 %v1147
        %v1219 = vunpack.c.l.b16 %v1148
        %v1220 = vunpack.c.l.b16 %v1149
        %v1221 = vunpack.c.l.b16 %v1150
        %v1222 = vunpack.c.l.b16 %v1151
        %v1223 = vunpack.c.l.b16 %v1152
        %v1224 = vunpack.c.l.b16 %v1153
        %v1225 = vunpack.c.l.b16 %v1154
        %v1226 = vunpack.c.l.b16 %v1155
        %v1227 = vunpack.c.l.b16 %v1156
        %v1228 = vunpack.c.l.b16 %v1157
        %v1229 = vunpack.c.l.b16 %v1158
        %v1230 = vunpack.c.l.b16 %v1159
        %v1231 = vunpack.c.l.b16 %v1160
        %v1232 = vunpack.c.l.b16 %v1161
        %v1233 = vunpack.c.l.b16 %v1162
        %v1234 = vunpack.c.l.b16 %v1163
        %v1235 = vunpack.c.l.b16 %v1164
        %v1236 = vunpack.c.l.b16 %v1165
        %v1237 = vunpack.c.l.b16 %v1166
        %v1238 = vunpack.c.l.b16 %v1167
        %v1239 = vpack.c.b16 %v1208, %v1207
        %v1240 = vpack.c.b16 %v1210, %v1209
        %v1241 = vpack.c.b16 %v1212, %v1211
        %v1242 = vpack.c.b16 %v1214, %v1213
        %v1243 = vpack.c.b16 %v1216, %v1215
        %v1244 = vpack.c.b16 %v1218, %v1217
        %v1245 = vpack.c.b16 %v1220, %v1219
        %v1246 = vpack.c.b16 %v1222, %v1221
        %v1247 = vpack.c.b16 %v1224, %v1223
        %v1248 = vpack.c.b16 %v1226, %v1225
        %v1249 = vpack.c.b16 %v1228, %v1227
        %v1250 = vpack.c.b16 %v1230, %v1229
        %v1251 = vpack.c.b16 %v1232, %v1231
        %v1252 = vpack.c.b16 %v1234, %v1233
        %v1253 = vpack.c.b16 %v1236, %v1235
        %v1254 = vpack.c.b16 %v1238, %v1237
        %1271 = vmatprep.subr.bf16.mxu0 0
        %1272 = vmatpush1.bf16.msra.mxu0 %v1239
        %1273 = vmatprep.subr.bf16.mxu0 0
        %1274 = vmatpush1.bf16.msra.mxu0 %v1240
        %1275 = vmatprep.subr.bf16.mxu0 0
        %1276 = vmatpush1.bf16.msra.mxu0 %v1241
        %1277 = vmatprep.subr.bf16.mxu0 0
        %1278 = vmatpush1.bf16.msra.mxu0 %v1242
        %1279 = vmatprep.subr.bf16.mxu0 0
        %1280 = vmatpush1.bf16.msra.mxu0 %v1243
        %1281 = vmatprep.subr.bf16.mxu0 0
        %1282 = vmatpush1.bf16.msra.mxu0 %v1244
        %1283 = vmatprep.subr.bf16.mxu0 0
        %1284 = vmatpush1.bf16.msra.mxu0 %v1245
        %1285 = vmatprep.subr.bf16.mxu0 0
        %1286 = vmatpush1.bf16.msra.mxu0 %v1246
        %1287 = vmatprep.subr.bf16.mxu0 0
        %1288 = vmatpush1.bf16.msra.mxu0 %v1247
        %1289 = vmatprep.subr.bf16.mxu0 0
        %1290 = vmatpush1.bf16.msra.mxu0 %v1248
        %1291 = vmatprep.subr.bf16.mxu0 0
        %1292 = vmatpush1.bf16.msra.mxu0 %v1249
        %1293 = vmatprep.subr.bf16.mxu0 0
        %1294 = vmatpush1.bf16.msra.mxu0 %v1250
        %1295 = vmatprep.subr.bf16.mxu0 0
        %1296 = vmatpush1.bf16.msra.mxu0 %v1251
        %1297 = vmatprep.subr.bf16.mxu0 0
        %1298 = vmatpush1.bf16.msra.mxu0 %v1252
        %1299 = vmatprep.subr.bf16.mxu0 0
        %1300 = vmatpush1.bf16.msra.mxu0 %v1253
        %1301 = vmatprep.subr.bf16.mxu0 0
        %1302 = vmatpush1.bf16.msra.mxu0 %v1254
        %1303 = vmatprep.mubr.bf16.mxu0 %v1073
        %1304 = vmatmul.mubr.bf16.gmra.mrb[0].mxu0 %v1072
        %v1305 = vpop.f32.mrb[0].mxu0
        %v1306 = vadd.f32 %v1173, %v1305
        %v1307 = vpop.f32.mrb[0].mxu0
        %v1308 = vpop.f32.mrb[0].mxu0
        %v1309 = vadd.f32 %v1173, %v1308
        %v1310 = vpop.f32.mrb[0].mxu0
        %1311 = vmatprep.mubr.bf16.mxu0 %v1075
        %1312 = vmatmul.mubr.bf16.gmra.mrb[0].mxu0 %v1074
        %v1313 = vpop.f32.mrb[0].mxu0
        %v1314 = vadd.f32 %v1173, %v1313
        %v1315 = vpop.f32.mrb[0].mxu0
        %v1316 = vpop.f32.mrb[0].mxu0
        %v1317 = vadd.f32 %v1173, %v1316
        %v1318 = vpop.f32.mrb[0].mxu0
        %1319 = vmatprep.mubr.bf16.mxu0 %v1077
        %1320 = vmatmul.mubr.bf16.gmra.mrb[0].mxu0 %v1076
        %v1321 = vpop.f32.mrb[0].mxu0
        %v1322 = vadd.f32 %v1173, %v1321
        %v1323 = vpop.f32.mrb[0].mxu0
        %v1324 = vpop.f32.mrb[0].mxu0
        %v1325 = vadd.f32 %v1173, %v1324
        %v1326 = vpop.f32.mrb[0].mxu0
        %1327 = vmatprep.mubr.bf16.mxu0 %v1079
        %1328 = vmatmul.mubr.bf16.gmra.mrb[0].mxu0 %v1078
        %v1329 = vpop.f32.mrb[0].mxu0
        %v1330 = vadd.f32 %v1173, %v1329
        %v1331 = vpop.f32.mrb[0].mxu0
        %v1332 = vpop.f32.mrb[0].mxu0
        %v1333 = vadd.f32 %v1173, %v1332
        %v1334 = vpop.f32.mrb[0].mxu0
        %1335 = vmatprep.mubr.bf16.mxu0 %v1081
        %1336 = vmatmul.mubr.bf16.gmra.mrb[0].mxu0 %v1080
        %v1337 = vpop.f32.mrb[0].mxu0
        %v1338 = vadd.f32 %v1173, %v1337
        %v1339 = vpop.f32.mrb[0].mxu0
        %v1340 = vpop.f32.mrb[0].mxu0
        %v1341 = vadd.f32 %v1173, %v1340
        %v1342 = vpop.f32.mrb[0].mxu0
        %1343 = vmatprep.mubr.bf16.mxu0 %v1083
        %1344 = vmatmul.mubr.bf16.gmra.mrb[0].mxu0 %v1082
        %v1345 = vpop.f32.mrb[0].mxu0
        %v1346 = vadd.f32 %v1173, %v1345
        %v1347 = vpop.f32.mrb[0].mxu0
        %v1348 = vpop.f32.mrb[0].mxu0
        %v1349 = vadd.f32 %v1173, %v1348
        %v1350 = vpop.f32.mrb[0].mxu0
        %1351 = vmatprep.mubr.bf16.mxu0 %v1085
        %1352 = vmatmul.mubr.bf16.gmra.mrb[0].mxu0 %v1084
        %v1353 = vpop.f32.mrb[0].mxu0
        %v1354 = vadd.f32 %v1173, %v1353
        %v1355 = vpop.f32.mrb[0].mxu0
        %v1356 = vpop.f32.mrb[0].mxu0
        %v1357 = vadd.f32 %v1173, %v1356
        %v1358 = vpop.f32.mrb[0].mxu0
        %1359 = vmatprep.mubr.bf16.mxu0 %v1087
        %1360 = vmatmul.mubr.bf16.gmra.mrb[0].mxu0 %v1086
        %v1361 = vpop.f32.mrb[0].mxu0
        %v1362 = vadd.f32 %v1173, %v1361
        %v1363 = vpop.f32.mrb[0].mxu0
        %v1364 = vpop.f32.mrb[0].mxu0
        %v1365 = vadd.f32 %v1173, %v1364
        %v1366 = vpop.f32.mrb[0].mxu0
        %1367 = vmatprep.mubr.bf16.mxu0 %v1089
        %1368 = vmatmul.mubr.bf16.gmra.mrb[0].mxu0 %v1088
        %v1369 = vpop.f32.mrb[0].mxu0
        %v1370 = vadd.f32 %v1173, %v1369
        %v1371 = vpop.f32.mrb[0].mxu0
        %v1372 = vpop.f32.mrb[0].mxu0
        %v1373 = vadd.f32 %v1173, %v1372
        %v1374 = vpop.f32.mrb[0].mxu0
        %1375 = vmatprep.mubr.bf16.mxu0 %v1091
        %1376 = vmatmul.mubr.bf16.gmra.mrb[0].mxu0 %v1090
        %v1377 = vpop.f32.mrb[0].mxu0
        %v1378 = vadd.f32 %v1173, %v1377
        %v1379 = vpop.f32.mrb[0].mxu0
        %v1380 = vpop.f32.mrb[0].mxu0
        %v1381 = vadd.f32 %v1173, %v1380
        %v1382 = vpop.f32.mrb[0].mxu0
        %1383 = vmatprep.mubr.bf16.mxu0 %v1093
        %1384 = vmatmul.mubr.bf16.gmra.mrb[0].mxu0 %v1092
        %v1385 = vpop.f32.mrb[0].mxu0
        %v1386 = vadd.f32 %v1173, %v1385
        %v1387 = vpop.f32.mrb[0].mxu0
        %v1388 = vpop.f32.mrb[0].mxu0
        %v1389 = vadd.f32 %v1173, %v1388
        %v1390 = vpop.f32.mrb[0].mxu0
        %1391 = vmatprep.mubr.bf16.mxu0 %v1095
        %1392 = vmatmul.mubr.bf16.gmra.mrb[0].mxu0 %v1094
        %v1393 = vpop.f32.mrb[0].mxu0
        %v1394 = vadd.f32 %v1173, %v1393
        %v1395 = vpop.f32.mrb[0].mxu0
        %v1396 = vpop.f32.mrb[0].mxu0
        %v1397 = vadd.f32 %v1173, %v1396
        %v1398 = vpop.f32.mrb[0].mxu0
        %1399 = vmatprep.mubr.bf16.mxu0 %v1097
        %1400 = vmatmul.mubr.bf16.gmra.mrb[0].mxu0 %v1096
        %v1401 = vpop.f32.mrb[0].mxu0
        %v1402 = vadd.f32 %v1173, %v1401
        %v1403 = vpop.f32.mrb[0].mxu0
        %v1404 = vpop.f32.mrb[0].mxu0
        %v1405 = vadd.f32 %v1173, %v1404
        %v1406 = vpop.f32.mrb[0].mxu0
        %1407 = vmatprep.mubr.bf16.mxu0 %v1099
        %1408 = vmatmul.mubr.bf16.gmra.mrb[0].mxu0 %v1098
        %v1409 = vpop.f32.mrb[0].mxu0
        %v1410 = vadd.f32 %v1173, %v1409
        %v1411 = vpop.f32.mrb[0].mxu0
        %v1412 = vpop.f32.mrb[0].mxu0
        %v1413 = vadd.f32 %v1173, %v1412
        %v1414 = vpop.f32.mrb[0].mxu0
        %1415 = vmatprep.mubr.bf16.mxu0 %v1101
        %1416 = vmatmul.mubr.bf16.gmra.mrb[0].mxu0 %v1100
        %v1417 = vpop.f32.mrb[0].mxu0
        %v1418 = vadd.f32 %v1173, %v1417
        %v1419 = vpop.f32.mrb[0].mxu0
        %v1420 = vpop.f32.mrb[0].mxu0
        %v1421 = vadd.f32 %v1173, %v1420
        %v1422 = vpop.f32.mrb[0].mxu0
        %1423 = vmatprep.mubr.bf16.mxu0 %v1103
        %1424 = vmatmul.mubr.bf16.gmra.mrb[0].mxu0 %v1102
        %v1425 = vpop.f32.mrb[0].mxu0
        %v1426 = vadd.f32 %v1173, %v1425
        %v1427 = vpop.f32.mrb[0].mxu0
        %v1428 = vpop.f32.mrb[0].mxu0
        %v1429 = vadd.f32 %v1173, %v1428
        %v1430 = vpop.f32.mrb[0].mxu0
        %1431 = vmatprep.mubr.bf16.mxu0 %v1105
        %1432 = vmatmul.mubr.bf16.gmra.mrb[0].mxu0 %v1104
        %v1433 = vpop.f32.mrb[0].mxu0
        %v1434 = vadd.f32 %v1173, %v1433
        %v1435 = vpop.f32.mrb[0].mxu0
        %v1436 = vpop.f32.mrb[0].mxu0
        %v1437 = vadd.f32 %v1173, %v1436
        %v1438 = vpop.f32.mrb[0].mxu0
        %1439 = vmatprep.mubr.bf16.mxu0 %v1107
        %1440 = vmatmul.mubr.bf16.gmra.mrb[0].mxu0 %v1106
        %v1441 = vpop.f32.mrb[0].mxu0
        %v1442 = vadd.f32 %v1173, %v1441
        %v1443 = vpop.f32.mrb[0].mxu0
        %v1444 = vpop.f32.mrb[0].mxu0
        %v1445 = vadd.f32 %v1173, %v1444
        %v1446 = vpop.f32.mrb[0].mxu0
        %1447 = vmatprep.mubr.bf16.mxu0 %v1109
        %1448 = vmatmul.mubr.bf16.gmra.mrb[0].mxu0 %v1108
        %v1449 = vpop.f32.mrb[0].mxu0
        %v1450 = vadd.f32 %v1173, %v1449
        %v1451 = vpop.f32.mrb[0].mxu0
        %v1452 = vpop.f32.mrb[0].mxu0
        %v1453 = vadd.f32 %v1173, %v1452
        %v1454 = vpop.f32.mrb[0].mxu0
        %1455 = vmatprep.mubr.bf16.mxu0 %v1111
        %1456 = vmatmul.mubr.bf16.gmra.mrb[0].mxu0 %v1110
        %v1457 = vpop.f32.mrb[0].mxu0
        %v1458 = vadd.f32 %v1173, %v1457
        %v1459 = vpop.f32.mrb[0].mxu0
        %v1460 = vpop.f32.mrb[0].mxu0
        %v1461 = vadd.f32 %v1173, %v1460
        %v1462 = vpop.f32.mrb[0].mxu0
        %1463 = vmatprep.mubr.bf16.mxu0 %v1113
        %1464 = vmatmul.mubr.bf16.gmra.mrb[0].mxu0 %v1112
        %v1465 = vpop.f32.mrb[0].mxu0
        %v1466 = vadd.f32 %v1173, %v1465
        %v1467 = vpop.f32.mrb[0].mxu0
        %v1468 = vpop.f32.mrb[0].mxu0
        %v1469 = vadd.f32 %v1173, %v1468
        %v1470 = vpop.f32.mrb[0].mxu0
        %1471 = vmatprep.mubr.bf16.mxu0 %v1115
        %1472 = vmatmul.mubr.bf16.gmra.mrb[0].mxu0 %v1114
        %v1473 = vpop.f32.mrb[0].mxu0
        %v1474 = vadd.f32 %v1173, %v1473
        %v1475 = vpop.f32.mrb[0].mxu0
        %v1476 = vpop.f32.mrb[0].mxu0
        %v1477 = vadd.f32 %v1173, %v1476
        %v1478 = vpop.f32.mrb[0].mxu0
        %1479 = vmatprep.mubr.bf16.mxu0 %v1117
        %1480 = vmatmul.mubr.bf16.gmra.mrb[0].mxu0 %v1116
        %v1481 = vpop.f32.mrb[0].mxu0
        %v1482 = vadd.f32 %v1173, %v1481
        %v1483 = vpop.f32.mrb[0].mxu0
        %v1484 = vpop.f32.mrb[0].mxu0
        %v1485 = vadd.f32 %v1173, %v1484
        %v1486 = vpop.f32.mrb[0].mxu0
        %1487 = vmatprep.mubr.bf16.mxu0 %v1119
        %1488 = vmatmul.mubr.bf16.gmra.mrb[0].mxu0 %v1118
        %v1489 = vpop.f32.mrb[0].mxu0
        %v1490 = vadd.f32 %v1173, %v1489
        %v1491 = vpop.f32.mrb[0].mxu0
        %v1492 = vpop.f32.mrb[0].mxu0
        %v1493 = vadd.f32 %v1173, %v1492
        %v1494 = vpop.f32.mrb[0].mxu0
        %1495 = vmatprep.mubr.bf16.mxu0 %v1121
        %1496 = vmatmul.mubr.bf16.gmra.mrb[0].mxu0 %v1120
        %v1497 = vpop.f32.mrb[0].mxu0
        %v1498 = vadd.f32 %v1173, %v1497
        %v1499 = vpop.f32.mrb[0].mxu0
        %v1500 = vpop.f32.mrb[0].mxu0
        %v1501 = vadd.f32 %v1173, %v1500
        %v1502 = vpop.f32.mrb[0].mxu0
        %1503 = vmatprep.mubr.bf16.mxu0 %v1123
        %1504 = vmatmul.mubr.bf16.gmra.mrb[0].mxu0 %v1122
        %v1505 = vpop.f32.mrb[0].mxu0
        %v1506 = vadd.f32 %v1173, %v1505
        %v1507 = vpop.f32.mrb[0].mxu0
        %v1508 = vpop.f32.mrb[0].mxu0
        %v1509 = vadd.f32 %v1173, %v1508
        %v1510 = vpop.f32.mrb[0].mxu0
        %1511 = vmatprep.mubr.bf16.mxu0 %v1125
        %1512 = vmatmul.mubr.bf16.gmra.mrb[0].mxu0 %v1124
        %v1513 = vpop.f32.mrb[0].mxu0
        %v1514 = vadd.f32 %v1173, %v1513
        %v1515 = vpop.f32.mrb[0].mxu0
        %v1516 = vpop.f32.mrb[0].mxu0
        %v1517 = vadd.f32 %v1173, %v1516
        %v1518 = vpop.f32.mrb[0].mxu0
        %1519 = vmatprep.mubr.bf16.mxu0 %v1127
        %1520 = vmatmul.mubr.bf16.gmra.mrb[0].mxu0 %v1126
        %v1521 = vpop.f32.mrb[0].mxu0
        %v1522 = vadd.f32 %v1173, %v1521
        %v1523 = vpop.f32.mrb[0].mxu0
        %v1524 = vpop.f32.mrb[0].mxu0
        %v1525 = vadd.f32 %v1173, %v1524
        %v1526 = vpop.f32.mrb[0].mxu0
        %1527 = vmatprep.mubr.bf16.mxu0 %v1129
        %1528 = vmatmul.mubr.bf16.gmra.mrb[0].mxu0 %v1128
        %v1529 = vpop.f32.mrb[0].mxu0
        %v1530 = vadd.f32 %v1173, %v1529
        %v1531 = vpop.f32.mrb[0].mxu0
        %v1532 = vpop.f32.mrb[0].mxu0
        %v1533 = vadd.f32 %v1173, %v1532
        %v1534 = vpop.f32.mrb[0].mxu0
        %1535 = vmatprep.mubr.bf16.mxu0 %v1131
        %1536 = vmatmul.mubr.bf16.gmra.mrb[0].mxu0 %v1130
        %v1537 = vpop.f32.mrb[0].mxu0
        %v1538 = vadd.f32 %v1173, %v1537
        %v1539 = vpop.f32.mrb[0].mxu0
        %v1540 = vpop.f32.mrb[0].mxu0
        %v1541 = vadd.f32 %v1173, %v1540
        %v1542 = vpop.f32.mrb[0].mxu0
        %1543 = vmatprep.mubr.bf16.mxu0 %v1133
        %1544 = vmatmul.mubr.bf16.gmra.mrb[0].mxu0 %v1132
        %v1545 = vpop.f32.mrb[0].mxu0
        %v1546 = vadd.f32 %v1173, %v1545
        %v1547 = vpop.f32.mrb[0].mxu0
        %v1548 = vpop.f32.mrb[0].mxu0
        %v1549 = vadd.f32 %v1173, %v1548
        %v1550 = vpop.f32.mrb[0].mxu0
        %1551 = vmatprep.mubr.bf16.mxu0 %v1135
        %1552 = vmatmul.mubr.bf16.gmra.mrb[0].mxu0 %v1134
        %v1553 = vpop.f32.mrb[0].mxu0
        %v1554 = vadd.f32 %v1173, %v1553
        %v1555 = vpop.f32.mrb[0].mxu0
        %v1556 = vpop.f32.mrb[0].mxu0
        %v1557 = vadd.f32 %v1173, %v1556
        %v1558 = vpop.f32.mrb[0].mxu0
        %1559 = vdwg.mxu0
        %v1560 = vpack.c.bf16 %v1309, %v1306
        %v1561 = vpack.c.bf16 %v1317, %v1314
        %v1562 = vpack.c.bf16 %v1325, %v1322
        %v1563 = vpack.c.bf16 %v1333, %v1330
        %v1564 = vpack.c.bf16 %v1341, %v1338
        %v1565 = vpack.c.bf16 %v1349, %v1346
        %v1566 = vpack.c.bf16 %v1357, %v1354
        %v1567 = vpack.c.bf16 %v1365, %v1362
        %v1568 = vpack.c.bf16 %v1373, %v1370
        %v1569 = vpack.c.bf16 %v1381, %v1378
        %v1570 = vpack.c.bf16 %v1389, %v1386
        %v1571 = vpack.c.bf16 %v1397, %v1394
        %v1572 = vpack.c.bf16 %v1405, %v1402
        %v1573 = vpack.c.bf16 %v1413, %v1410
        %v1574 = vpack.c.bf16 %v1421, %v1418
        %v1575 = vpack.c.bf16 %v1429, %v1426
        %v1576 = vpack.c.bf16 %v1437, %v1434
        %v1577 = vpack.c.bf16 %v1445, %v1442
        %v1578 = vpack.c.bf16 %v1453, %v1450
        %v1579 = vpack.c.bf16 %v1461, %v1458
        %v1580 = vpack.c.bf16 %v1469, %v1466
        %v1581 = vpack.c.bf16 %v1477, %v1474
        %v1582 = vpack.c.bf16 %v1485, %v1482
        %v1583 = vpack.c.bf16 %v1493, %v1490
        %v1584 = vpack.c.bf16 %v1501, %v1498
        %v1585 = vpack.c.bf16 %v1509, %v1506
        %v1586 = vpack.c.bf16 %v1517, %v1514
        %v1587 = vpack.c.bf16 %v1525, %v1522
        %v1588 = vpack.c.bf16 %v1533, %v1530
        %v1589 = vpack.c.bf16 %v1541, %v1538
        %v1590 = vpack.c.bf16 %v1549, %v1546
        %v1591 = vpack.c.bf16 %v1557, %v1554
        %v1624 = vunpack.c.l.b16 %v1560
        %v1625 = vunpack.c.h.b16 %v1560
        %v1626 = vunpack.c.l.b16 %v1561
        %v1627 = vunpack.c.h.b16 %v1561
        %v1628 = vunpack.c.l.b16 %v1562
        %v1629 = vunpack.c.h.b16 %v1562
        %v1630 = vunpack.c.l.b16 %v1563
        %v1631 = vunpack.c.h.b16 %v1563
        %v1632 = vunpack.c.l.b16 %v1564
        %v1633 = vunpack.c.h.b16 %v1564
        %v1634 = vunpack.c.l.b16 %v1565
        %v1635 = vunpack.c.h.b16 %v1565
        %v1636 = vunpack.c.l.b16 %v1566
        %v1637 = vunpack.c.h.b16 %v1566
        %v1638 = vunpack.c.l.b16 %v1567
        %v1639 = vunpack.c.h.b16 %v1567
        %v1640 = vunpack.c.l.b16 %v1568
        %v1641 = vunpack.c.h.b16 %v1568
        %v1642 = vunpack.c.l.b16 %v1569
        %v1643 = vunpack.c.h.b16 %v1569
        %v1644 = vunpack.c.l.b16 %v1570
        %v1645 = vunpack.c.h.b16 %v1570
        %v1646 = vunpack.c.l.b16 %v1571
        %v1647 = vunpack.c.h.b16 %v1571
        %v1648 = vunpack.c.l.b16 %v1572
        %v1649 = vunpack.c.h.b16 %v1572
        %v1650 = vunpack.c.l.b16 %v1573
        %v1651 = vunpack.c.h.b16 %v1573
        %v1652 = vunpack.c.l.b16 %v1574
        %v1653 = vunpack.c.h.b16 %v1574
        %v1654 = vunpack.c.l.b16 %v1575
        %v1655 = vunpack.c.h.b16 %v1575
        %v1656 = vunpack.c.l.b16 %v1576
        %v1657 = vunpack.c.h.b16 %v1576
        %v1658 = vunpack.c.l.b16 %v1577
        %v1659 = vunpack.c.h.b16 %v1577
        %v1660 = vunpack.c.l.b16 %v1578
        %v1661 = vunpack.c.h.b16 %v1578
        %v1662 = vunpack.c.l.b16 %v1579
        %v1663 = vunpack.c.h.b16 %v1579
        %v1664 = vunpack.c.l.b16 %v1580
        %v1665 = vunpack.c.h.b16 %v1580
        %v1666 = vunpack.c.l.b16 %v1581
        %v1667 = vunpack.c.h.b16 %v1581
        %v1668 = vunpack.c.l.b16 %v1582
        %v1669 = vunpack.c.h.b16 %v1582
        %v1670 = vunpack.c.l.b16 %v1583
        %v1671 = vunpack.c.h.b16 %v1583
        %v1672 = vunpack.c.l.b16 %v1584
        %v1673 = vunpack.c.h.b16 %v1584
        %v1674 = vunpack.c.l.b16 %v1585
        %v1675 = vunpack.c.h.b16 %v1585
        %v1676 = vunpack.c.l.b16 %v1586
        %v1677 = vunpack.c.h.b16 %v1586
        %v1678 = vunpack.c.l.b16 %v1587
        %v1679 = vunpack.c.h.b16 %v1587
        %v1680 = vunpack.c.l.b16 %v1588
        %v1681 = vunpack.c.h.b16 %v1588
        %v1682 = vunpack.c.l.b16 %v1589
        %v1683 = vunpack.c.h.b16 %v1589
        %v1684 = vunpack.c.l.b16 %v1590
        %v1685 = vunpack.c.h.b16 %v1590
        %v1686 = vunpack.c.l.b16 %v1591
        %v1687 = vunpack.c.h.b16 %v1591
        %v1688 = vpack.c.b16 %v1624, %v1624
        %v1689 = vpack.c.b16 %v1625, %v1625
        %v1690 = vpack.c.b16 %v1626, %v1626
        %v1691 = vpack.c.b16 %v1627, %v1627
        %v1692 = vpack.c.b16 %v1628, %v1628
        %v1693 = vpack.c.b16 %v1629, %v1629
        %v1694 = vpack.c.b16 %v1630, %v1630
        %v1695 = vpack.c.b16 %v1631, %v1631
        %v1696 = vpack.c.b16 %v1632, %v1632
        %v1697 = vpack.c.b16 %v1633, %v1633
        %v1698 = vpack.c.b16 %v1634, %v1634
        %v1699 = vpack.c.b16 %v1635, %v1635
        %v1700 = vpack.c.b16 %v1636, %v1636
        %v1701 = vpack.c.b16 %v1637, %v1637
        %v1702 = vpack.c.b16 %v1638, %v1638
        %v1703 = vpack.c.b16 %v1639, %v1639
        %v1704 = vpack.c.b16 %v1640, %v1640
        %v1705 = vpack.c.b16 %v1641, %v1641
        %v1706 = vpack.c.b16 %v1642, %v1642
        %v1707 = vpack.c.b16 %v1643, %v1643
        %v1708 = vpack.c.b16 %v1644, %v1644
        %v1709 = vpack.c.b16 %v1645, %v1645
        %v1710 = vpack.c.b16 %v1646, %v1646
        %v1711 = vpack.c.b16 %v1647, %v1647
        %v1712 = vpack.c.b16 %v1648, %v1648
        %v1713 = vpack.c.b16 %v1649, %v1649
        %v1714 = vpack.c.b16 %v1650, %v1650
        %v1715 = vpack.c.b16 %v1651, %v1651
        %v1716 = vpack.c.b16 %v1652, %v1652
        %v1717 = vpack.c.b16 %v1653, %v1653
        %v1718 = vpack.c.b16 %v1654, %v1654
        %v1719 = vpack.c.b16 %v1655, %v1655
        %v1720 = vpack.c.b16 %v1656, %v1656
        %v1721 = vpack.c.b16 %v1657, %v1657
        %v1722 = vpack.c.b16 %v1658, %v1658
        %v1723 = vpack.c.b16 %v1659, %v1659
        %v1724 = vpack.c.b16 %v1660, %v1660
        %v1725 = vpack.c.b16 %v1661, %v1661
        %v1726 = vpack.c.b16 %v1662, %v1662
        %v1727 = vpack.c.b16 %v1663, %v1663
        %v1728 = vpack.c.b16 %v1664, %v1664
        %v1729 = vpack.c.b16 %v1665, %v1665
        %v1730 = vpack.c.b16 %v1666, %v1666
        %v1731 = vpack.c.b16 %v1667, %v1667
        %v1732 = vpack.c.b16 %v1668, %v1668
        %v1733 = vpack.c.b16 %v1669, %v1669
        %v1734 = vpack.c.b16 %v1670, %v1670
        %v1735 = vpack.c.b16 %v1671, %v1671
        %v1736 = vpack.c.b16 %v1672, %v1672
        %v1737 = vpack.c.b16 %v1673, %v1673
        %v1738 = vpack.c.b16 %v1674, %v1674
        %v1739 = vpack.c.b16 %v1675, %v1675
        %v1740 = vpack.c.b16 %v1676, %v1676
        %v1741 = vpack.c.b16 %v1677, %v1677
        %v1742 = vpack.c.b16 %v1678, %v1678
        %v1743 = vpack.c.b16 %v1679, %v1679
        %v1744 = vpack.c.b16 %v1680, %v1680
        %v1745 = vpack.c.b16 %v1681, %v1681
        %v1746 = vpack.c.b16 %v1682, %v1682
        %v1747 = vpack.c.b16 %v1683, %v1683
        %v1748 = vpack.c.b16 %v1684, %v1684
        %v1749 = vpack.c.b16 %v1685, %v1685
        %v1750 = vpack.c.b16 %v1686, %v1686
        %v1751 = vpack.c.b16 %v1687, %v1687
        %1816 = vst [vmem:[%s218] sm:$0xf] %v1688
        %1817 = vst [vmem:[%s218 + $0x4] sm:$0xf] %v1689
        %1818 = vst [vmem:[%s218 + $0x8] sm:$0xf] %v1690
        %1819 = vst [vmem:[%s218 + $0xc] sm:$0xf] %v1691
        %1820 = vst [vmem:[%s218 + $0x10] sm:$0xf] %v1692
        %1821 = vst [vmem:[%s218 + $0x14] sm:$0xf] %v1693
        %1822 = vst [vmem:[%s218 + $0x18] sm:$0xf] %v1694
        %1823 = vst [vmem:[%s218 + $0x1c] sm:$0xf] %v1695
        %1824 = vst [vmem:[%s218 + $0x20] sm:$0xf] %v1696
        %1825 = vst [vmem:[%s218 + $0x24] sm:$0xf] %v1697
        %1826 = vst [vmem:[%s218 + $0x28] sm:$0xf] %v1698
        %1827 = vst [vmem:[%s218 + $0x2c] sm:$0xf] %v1699
        %1828 = vst [vmem:[%s218 + $0x30] sm:$0xf] %v1700
        %1829 = vst [vmem:[%s218 + $0x34] sm:$0xf] %v1701
        %1830 = vst [vmem:[%s218 + $0x38] sm:$0xf] %v1702
        %1831 = vst [vmem:[%s218 + $0x3c] sm:$0xf] %v1703
        %1832 = vst [vmem:[%s218 + $0x40] sm:$0xf] %v1704
        %1833 = vst [vmem:[%s218 + $0x44] sm:$0xf] %v1705
        %1834 = vst [vmem:[%s218 + $0x48] sm:$0xf] %v1706
        %1835 = vst [vmem:[%s218 + $0x4c] sm:$0xf] %v1707
        %1836 = vst [vmem:[%s218 + $0x50] sm:$0xf] %v1708
        %1837 = vst [vmem:[%s218 + $0x54] sm:$0xf] %v1709
        %1838 = vst [vmem:[%s218 + $0x58] sm:$0xf] %v1710
        %1839 = vst [vmem:[%s218 + $0x5c] sm:$0xf] %v1711
        %1840 = vst [vmem:[%s218 + $0x60] sm:$0xf] %v1712
        %1841 = vst [vmem:[%s218 + $0x64] sm:$0xf] %v1713
        %1842 = vst [vmem:[%s218 + $0x68] sm:$0xf] %v1714
        %1843 = vst [vmem:[%s218 + $0x6c] sm:$0xf] %v1715
        %1844 = vst [vmem:[%s218 + $0x70] sm:$0xf] %v1716
        %1845 = vst [vmem:[%s218 + $0x74] sm:$0xf] %v1717
        %1846 = vst [vmem:[%s218 + $0x78] sm:$0xf] %v1718
        %1847 = vst [vmem:[%s218 + $0x7c] sm:$0xf] %v1719
        %1848 = vst [vmem:[%s218 + $0x80] sm:$0xf] %v1720
        %1849 = vst [vmem:[%s218 + $0x84] sm:$0xf] %v1721
        %1850 = vst [vmem:[%s218 + $0x88] sm:$0xf] %v1722
        %1851 = vst [vmem:[%s218 + $0x8c] sm:$0xf] %v1723
        %1852 = vst [vmem:[%s218 + $0x90] sm:$0xf] %v1724
        %1853 = vst [vmem:[%s218 + $0x94] sm:$0xf] %v1725
        %1854 = vst [vmem:[%s218 + $0x98] sm:$0xf] %v1726
        %1855 = vst [vmem:[%s218 + $0x9c] sm:$0xf] %v1727
        %1856 = vst [vmem:[%s218 + $0xa0] sm:$0xf] %v1728
        %1857 = vst [vmem:[%s218 + $0xa4] sm:$0xf] %v1729
        %1858 = vst [vmem:[%s218 + $0xa8] sm:$0xf] %v1730
        %1859 = vst [vmem:[%s218 + $0xac] sm:$0xf] %v1731
        %1860 = vst [vmem:[%s218 + $0xb0] sm:$0xf] %v1732
        %1861 = vst [vmem:[%s218 + $0xb4] sm:$0xf] %v1733
        %1862 = vst [vmem:[%s218 + $0xb8] sm:$0xf] %v1734
        %1863 = vst [vmem:[%s218 + $0xbc] sm:$0xf] %v1735
        %1864 = vst [vmem:[%s218 + $0xc0] sm:$0xf] %v1736
        %1865 = vst [vmem:[%s218 + $0xc4] sm:$0xf] %v1737
        %1866 = vst [vmem:[%s218 + $0xc8] sm:$0xf] %v1738
        %1867 = vst [vmem:[%s218 + $0xcc] sm:$0xf] %v1739
        %1868 = vst [vmem:[%s218 + $0xd0] sm:$0xf] %v1740
        %1869 = vst [vmem:[%s218 + $0xd4] sm:$0xf] %v1741
        %1870 = vst [vmem:[%s218 + $0xd8] sm:$0xf] %v1742
        %1871 = vst [vmem:[%s218 + $0xdc] sm:$0xf] %v1743
        %1872 = vst [vmem:[%s218 + $0xe0] sm:$0xf] %v1744
        %1873 = vst [vmem:[%s218 + $0xe4] sm:$0xf] %v1745
        %1874 = vst [vmem:[%s218 + $0xe8] sm:$0xf] %v1746
        %1875 = vst [vmem:[%s218 + $0xec] sm:$0xf] %v1747
        %1876 = vst [vmem:[%s218 + $0xf0] sm:$0xf] %v1748
        %1877 = vst [vmem:[%s218 + $0xf4] sm:$0xf] %v1749
        %1878 = vst [vmem:[%s218 + $0xf8] sm:$0xf] %v1750
        %1879 = vst [vmem:[%s218 + $0xfc] sm:$0xf] %v1751
        %s1880 = sand.u32 %s137, 1
        %s1881 = scalar_lea.sflag [#allocation3], %s1880
        %s1882 = sand.u32 %s137, 1
        %s1883 = smul.addr %s1882, 256
        %s1884 = scalar_lea.vmem [#allocation2], %s1883
        // Predicated region
        $region41: #{my_sequential_forward.1} parent=39 // pred_check
          %p1885 = pneg %p147
        $region42: #{my_sequential_forward.1} parent=39 // pred_check_branch
          %1887 = sbr.rel (%p1885) target = $region44
        $region43: #{my_sequential_forward.1} parent=39 // pred_region
          %s1888 = smul.u32 64, %s19
          %s1890 = ssub.s32 4096, 4096
          %1891 = vsyncadd %s1881, %s1890
          %s1892 = smul.addr %s1888, 64
          %s1893 = scalar_lea.hbm %s5, %s1892
          %s1894 = sshll.u32 %s1884, 4
          %s1895 = int_to_ptr.vmem [resolvable:$true] %s1894
          %1900 = dma.vmem_to_hbm [thread:$0]  %s1895, 4096, %s1893, %s1881, 64, 64, 4
        $region44: #{my_sequential_forward.1} parent=39 // pred_fallthru
          _
      $region40: #{my_sequential_forward.1} parent=5 // pred_fallthru
        _
      %p1901 = scmp.le.s32.totalorder 2, %s14
      // Predicated region
      $region45: #{my_sequential_forward.1} parent=5 // pred_check
        %p1902 = pneg %p1901
      $region46: #{my_sequential_forward.1} parent=5 // pred_check_branch
        %1904 = sbr.rel (%p1902) target = $region48
      $region47: #{my_sequential_forward.1} parent=5 // pred_region
        %s1905 = ssub.s32 %s14, 2
        // Predicated region
        $region49: #{my_sequential_forward.1} parent=47 // pred_check
          %p1906 = pneg %p153
        $region50: #{my_sequential_forward.1} parent=47 // pred_check_branch
          %1908 = sbr.rel (%p1906) target = $region52
        $region51: #{my_sequential_forward.1} parent=47 // pred_region
          %s1909 = sand.u32 %s138, 1
          %s1910 = scalar_lea.sflag [#allocation3], %s1909
          %s1911 = sand.u32 %s138, 1
          %s1912 = smul.addr %s1911, 256
          %s1913 = scalar_lea.vmem [#allocation2], %s1912
          %1914 = dma.done %s1910, 4096
        $region52: #{my_sequential_forward.1} parent=47 // pred_fallthru
          _
      $region48: #{my_sequential_forward.1} parent=5 // pred_fallthru
        _
    $region6: #{my_sequential_forward.1} parent=1 // loop_footer
      %s18 = sadd.s32 1, %s14
    $region7: #{my_sequential_forward.1} parent=1 // loop_footer_branch
      %13 = sbr.rel target = $region3
    $region8: #{my_sequential_forward.1} parent=1 // loop_exit
      _
    %1915 = vsyncpa [#allocation3], 1
    %s1916 = scalar_lea.sflag [#allocation3], 1
    %1917 = vsyncpa %s1916, 1

</llo_original>
